<compile_context>
chip_gen: v5e
topology: v5e:2x2
jax: 0.10.0
libtpu: 0.0.40
codegen_flags: <defaults>
</compile_context>

<pallas_src>
import functools

import numpy as np
import jax
import jax.numpy as jnp
from jax.experimental import pallas as pl
from jax.experimental.pallas import tpu as pltpu


_VMEM_LIMIT_BYTES = 32 * 1024 * 1024   # explicit scoped-VMEM budget; safe on v5e/v6e/v7x


# ----------------------------------------------------------------------------
# Tiling helpers
# ----------------------------------------------------------------------------
def _round_up(x, m):
    return ((x + m - 1) // m) * m


def _pick_channel_block(c, granularity=8):
    """Largest multiple-of-`granularity` divisor of c that is <= min(c//2, 64).

    Keeping the 'parallel' channel grid extent >= 2 lets both v7x TensorCores
    work (no-op on single-TC v5e/v6e).  Falls back to c (single block) when a
    suitable divisor does not exist (e.g. tiny channel counts).
    """
    if c % granularity != 0 or c <= granularity:
        return c
    best = None
    cap = min(c // 2, 64)
    for cb in range(granularity, cap + 1, granularity):
        if c % cb == 0:
            best = cb
    return best if best is not None else c


def _pick_tile_n(n, cap):
    """Lane-dense pixel tile: multiple of 128, capped at `cap`."""
    cap = max(128, (cap // 128) * 128)
    return min(cap, _round_up(max(n, 1), 128))


# ----------------------------------------------------------------------------
# Kernel 1: masked per-channel histogram (stand-in for cu.histogram), tiled.
#   Accumulates the ">= bin" count table (telescoped counts); the per-bin
#   histogram is the adjacent difference, computed on the tiny result in glue.
# ----------------------------------------------------------------------------
def _masked_hist_kernel(nbins, j_ref, m_ref, lo_ref, sc_ref, ge_ref):
    ti = pl.program_id(1)

    @pl.when(ti == 0)
    def _init():
        ge_ref[...] = jnp.zeros_like(ge_ref)

    J = j_ref[...]                            # (CB, TILE_N) f32
    m = m_ref[...]                            # (1,  TILE_N) f32 mask (0 on padding)
    lo = lo_ref[...]                          # (CB, 1) masked per-channel min
    sc = sc_ref[...]                          # (CB, 1) nbins / max(maxJ - minJ, eps)

    # TODO(synk): cu.histogram is an external CUDA extension; clamp-to-[0, nbins-1]
    # binning between the (precomputed) masked per-channel min/max is used here.
    binf = jnp.floor((J - lo) * sc)
    binf = jnp.clip(binf, 0.0, float(nbins - 1))
    binf = jnp.where(m > 0.0, binf, -1.0)     # excluded pixels never match any bin
    # Bin ids are small integers {-1 .. nbins-1}: exact in bf16.  bf16 compares
    # halve VALU work on v6e/v7x and the bf16 0/1 hit matrix is single-pass on
    # the MXU on every generation (harmless on v5e, which extends to f32).
    binb = binf.astype(jnp.bfloat16)

    # Stack the nbins ">= b" hit masks along the sublane/M axis and reduce the
    # lane axis with ONE MXU dot against a ones column instead of nbins skinny
    # dots (CB is a multiple of 16 so the bf16 concat offsets are vreg-aligned).
    hits = [(binb >= float(b)).astype(jnp.bfloat16) for b in range(nbins)]
    stacked = jnp.concatenate(hits, axis=0)                 # (nbins*CB, TILE_N) bf16
    ones_col = jnp.ones((J.shape[1], 1), jnp.bfloat16)
    ge_ref[...] += jnp.dot(stacked, ones_col,
                           preferred_element_type=jnp.float32)   # (nbins*CB, 1) counts


def masked_histogram(target_flat, mask_flat, nbins):
    """Masked per-channel histogram plus masked per-channel min / max."""
    C, N = target_flat.shape
    J = target_flat.astype(jnp.float32)
    m = mask_flat.astype(jnp.float32).reshape(1, N)

    # Global per-channel masked extrema: tiny reduction in plain JAX, fed to the
    # tiled kernel as (C, 1) vectors (the kernel needs *global* extrema).
    inside = m > 0.0
    big = jnp.float32(3e38)
    cnt = jnp.sum(inside.astype(jnp.float32))
    mn = jnp.min(jnp.where(inside, J, big), axis=1, keepdims=True)
    mx = jnp.max(jnp.where(inside, J, -big), axis=1, keepdims=True)
    mn = jnp.where(cnt > 0, mn, 0.0)                       # defined for empty mask
    mx = jnp.where(cnt > 0, mx, 0.0)
    scale = jnp.float32(nbins) / jnp.maximum(mx - mn, 1e-12)   # safe denominator

    # Pad channels to a multiple of 16 so the bf16 sublane stacking is aligned;
    # padded rows produce garbage counts that are discarded below.
    cpad = _round_up(C, 16)
    if cpad != C:
        J = jnp.pad(J, ((0, cpad - C), (0, 0)))
        mn_p = jnp.pad(mn, ((0, cpad - C), (0, 0)))
        sc_p = jnp.pad(scale, ((0, cpad - C), (0, 0)), constant_values=1.0)
    else:
        mn_p, sc_p = mn, scale

    cb = _pick_channel_block(cpad, granularity=16)
    # Budget the pixel tile so the stacked bf16 hit matrix stays ~<= 4 MiB.
    tile_cap = min(4096, max(256, ((4 << 20) // (nbins * cb * 2)) // 128 * 128))
    tile_n = _pick_tile_n(N, tile_cap)
    npad = _round_up(N, tile_n)
    if npad != N:                                          # lane-dense padding
        J = jnp.pad(J, ((0, 0), (0, npad - N)))
        m = jnp.pad(m, ((0, 0), (0, npad - N)))            # mask pad = 0 -> excluded

    grid = (cpad // cb, npad // tile_n)                    # (parallel, reduction-last)
    kernel = functools.partial(_masked_hist_kernel, nbins)
    ge = pl.pallas_call(
        kernel,
        out_shape=jax.ShapeDtypeStruct((nbins * cpad, 1), jnp.float32),
        grid=grid,
        in_specs=[
            pl.BlockSpec((cb, tile_n), lambda ci, ti: (ci, ti)),   # target pixels
            pl.BlockSpec((1, tile_n), lambda ci, ti: (0, ti)),     # mask
            pl.BlockSpec((cb, 1), lambda ci, ti: (ci, 0)),         # minJ
            pl.BlockSpec((cb, 1), lambda ci, ti: (ci, 0)),         # scale
        ],
        out_specs=pl.BlockSpec((nbins * cb, 1), lambda ci, ti: (ci, 0)),
        compiler_params=pltpu.CompilerParams(
            dimension_semantics=("parallel", "arbitrary"),
            vmem_limit_bytes=_VMEM_LIMIT_BYTES),
    )(J, m, mn_p, sc_p)

    # Undo the bin-major stacking on the tiny result: row = ci*nbins*cb + b*cb + c.
    ge = ge.reshape(cpad // cb, nbins, cb).transpose(0, 2, 1).reshape(cpad, nbins)
    ge = ge[:C]
    # ge[:, b] = #{masked pixels with bin >= b}  ->  hist[:, b] = ge[:, b] - ge[:, b+1]
    hist = ge - jnp.concatenate([ge[:, 1:], jnp.zeros((C, 1), ge.dtype)], axis=1)
    return hist, mn, mx


# ----------------------------------------------------------------------------
# Kernel 2: remap_hist + masked per-channel SSE (the hist_hook hot path), tiled.
#   remap[c, j] = T[idx[c, j]],  idx[c, j] = sum_b (cum_ref[c, b] < j + 1)
#   realized with a telescoped gather: T[0] + sum_b [cum < rng] * (T[b+1] - T[b]).
#   All compares / accumulation stay in f32 (cum and rng exceed bf16 int range).
# ----------------------------------------------------------------------------
def _remap_sse_kernel(nbins, n_valid, dtbl_ref, x_ref, cum_ref, sse_ref):
    ti = pl.program_id(1)

    @pl.when(ti == 0)
    def _init():
        sse_ref[...] = jnp.zeros_like(sse_ref)

    x = x_ref[...]                            # (CB, TILE_N) masked activations (padded)
    cum = cum_ref[...]                        # (CB, nbins)  normalized cumulative hist
    cb, tile_n = x.shape

    # (1, TILE_N) row indices; sublane broadcast happens implicitly in the compares.
    col = jax.lax.broadcasted_iota(jnp.int32, (1, tile_n), 1) + ti * tile_n
    rng = (col + 1).astype(jnp.float32)       # global 1-based pixel rank
    valid = col < n_valid                     # mask out lane padding

    # dtbl (SMEM scalars) = [T[0], T[1]-T[0], ..., T[nbins]-T[nbins-1]].
    remap = jnp.zeros((cb, tile_n), jnp.float32) + dtbl_ref[0]
    for b in range(nbins):
        delta = dtbl_ref[b + 1]                               # scalar from SMEM
        cmp = cum[:, b:b + 1] < rng                           # (CB,1)<(1,TILE_N)->(CB,TILE_N)
        remap = remap + jnp.where(cmp, delta, 0.0)

    diff = jnp.where(valid, x - remap, 0.0)
    ones_col = jnp.ones((tile_n, 1), jnp.float32)
    # Per-channel sum of squared diffs via the (otherwise idle) MXU; precision pinned.
    sse_ref[...] += jnp.dot(diff * diff, ones_col,
                            preferred_element_type=jnp.float32,
                            precision=jax.lax.Precision.HIGHEST)


def hist_hook_loss(of_masked, hisJ, strength):
    C, n = of_masked.shape
    nbins = hisJ.shape[1]
    assert 0 < nbins < n, "flat-gather semantics require nbins < #masked pixels"
    x = of_masked.astype(jnp.float32)

    # ---- tiny (C, nbins)-sized remap_hist preprocessing (plain JAX glue) ----
    hist = hisJ.astype(jnp.float32) * n / jnp.maximum(
        jnp.sum(hisJ, axis=1, keepdims=True), 1e-12)
    cum_ref = jnp.cumsum(hist, axis=1)
    cum_prev = jnp.concatenate(
        [jnp.zeros((C, 1), jnp.float32), cum_ref[:, :-1]], axis=1)

    # PyTorch flat .view(-1) gather quirk: idx <= nbins < n, so only
    # new_x[0, 0:nbins+1] is ever read.  Build that (nbins+1)-entry table here.
    ymin0 = jnp.min(x[0])
    ymax0 = jnp.max(x[0])
    step0 = (ymax0 - ymin0) / 256.0
    kk = jnp.arange(nbins + 1)
    rng_k = (kk + 1).astype(jnp.float32)
    idx0 = jnp.sum((cum_ref[0][None, :] < rng_k[:, None]).astype(jnp.int32), axis=1)
    cpf = cum_prev.reshape(-1)
    hf = hist.reshape(-1)
    ratio0 = jnp.clip((rng_k - cpf[idx0]) / (1e-8 + hf[idx0]), 0.0, 1.0)
    T = ymin0 + (ratio0 + idx0.astype(jnp.float32)) * step0
    T = jnp.where(kk == n - 2, ymax0, T)       # new_x[:, -2:-1] = ymax override
    dtbl = jnp.concatenate([T[:1], T[1:] - T[:-1]]).astype(jnp.float32)  # (nbins+1,)

    # ---- tiled Pallas kernel: telescoped remap + masked SSE ----
    cb = _pick_channel_block(C, granularity=8)
    tile_n = _pick_tile_n(n, 4096)
    npad = _round_up(n, tile_n)
    if npad != n:                              # lane-dense padding of the pixel axis
        x = jnp.pad(x, ((0, 0), (0, npad - n)))

    grid = (C // cb, npad // tile_n)
    kernel = functools.partial(_remap_sse_kernel, nbins, n)
    sse = pl.pallas_call(
        kernel,
        out_shape=jax.ShapeDtypeStruct((C, 1), jnp.float32),
        grid=grid,
        in_specs=[
            pl.BlockSpec(memory_space=pltpu.MemorySpace.SMEM),     # dtbl scalars
            pl.BlockSpec((cb, tile_n), lambda ci, ti: (ci, ti)),   # activations
            pl.BlockSpec((cb, nbins), lambda ci, ti: (ci, 0)),     # cum_ref (resident)
        ],
        out_specs=pl.BlockSpec((cb, 1), lambda ci, ti: (ci, 0)),
        compiler_params=pltpu.CompilerParams(
            dimension_semantics=("parallel", "arbitrary"),
            vmem_limit_bytes=_VMEM_LIMIT_BYTES),
    )(dtbl, x, cum_ref)

    return jnp.sum(sse) * (strength / float(C * n))


# ----------------------------------------------------------------------------
# Module wrapper mirroring the PyTorch HistLoss
# ----------------------------------------------------------------------------
class HistLoss:
    def __init__(self, strength, input, target, nbins, maskI, maskJ, mask):
        self.strength = float(strength)
        self.nbins = int(nbins)
        self.mask_original = mask
        _, c, h1, w1 = input.shape
        _, _, h2, w2 = target.shape
        self.nI = jnp.sum(maskI)
        self.nJ = jnp.sum(maskJ)
        # msk / msk_sub / expanded-mask buffers from the original __init__ are never
        # used in forward or the hook, so they are not materialized.
        J = target.reshape(c, h2 * w2)
        mJ = maskJ.reshape(1, h2 * w2)
        hist, self.minJ, self.maxJ = masked_histogram(J, mJ, self.nbins)
        self.hisJ = hist * (self.nI.astype(jnp.float32) / self.nJ.astype(jnp.float32))
        self.cumJ = jnp.cumsum(self.hisJ, axis=1)   # kept for parity; unused in the hook
        # Static column selection (mask >= 0.1) mirroring the hook's boolean indexing.
        self._keep = np.nonzero(np.asarray(mask).reshape(-1) >= 0.1)[0]
        self.loss = 0.0
        self.output = None

    def forward(self, x):
        # The PyTorch forward is an identity pass-through that only stashes the
        # activation; no Pallas copy (and no HBM round trip) is emitted for it.
        self.output = x
        return x

    def hist_hook(self):
        # TODO(synk): the PyTorch version registers this as a backward hook; here it
        # is exposed as an explicit method (autograd plumbing has no Pallas analog).
        c = self.output.shape[1]
        of = self.output.reshape(c, -1).astype(jnp.float32)
        mflat = jnp.asarray(self.mask_original).reshape(1, -1).astype(jnp.float32)
        # Gather first, multiply after: avoids a full C x H*W pre-gather pass.
        of_masked = of[:, self._keep] * mflat[:, self._keep]
        self.loss = hist_hook_loss(of_masked, self.hisJ, self.strength)
        return self.loss


# ----------------------------------------------------------------------------
# Pure-JAX references (numerical sanity checks)
# ----------------------------------------------------------------------------
def _ref_select_idx(t, idx):
    ch = t.shape[0]
    return t.reshape(-1)[idx.reshape(-1).astype(jnp.int32)].reshape(ch, -1)


def _ref_remap_hist(x, hist_ref):
    ch, n = x.shape
    ymin = jnp.min(x, axis=1, keepdims=True)
    ymax = jnp.max(x, axis=1, keepdims=True)
    hist = hist_ref * n / jnp.sum(hist_ref, axis=1, keepdims=True)
    cum_ref = jnp.cumsum(hist, axis=1)
    cum_prev = jnp.concatenate([jnp.zeros((ch, 1), hist.dtype), cum_ref[:, :-1]], axis=1)
    step = (ymax - ymin) / 256.0
    rng = jnp.arange(1, n + 1, dtype=jnp.float32)
    idx = jnp.sum((cum_ref[:, None, :] - rng[None, :, None] < 0).astype(jnp.float32), axis=2)
    ratio = (rng[None, :] - _ref_select_idx(cum_prev, idx)) / (1e-8 + _ref_select_idx(hist, idx))
    ratio = jnp.clip(ratio, 0.0, 1.0)
    new_x = ymin + (ratio + idx) * step
    new_x = new_x.at[:, n - 2].set(ymax[:, 0])
    return _ref_select_idx(new_x, idx)


if __name__ == "__main__":
    key = jax.random.PRNGKey(0)
    k1, k2, k3, k4, k5 = jax.random.split(key, 5)
    B, C, H, W = 1, 4, 16, 16
    nbins = 32
    strength = 1.0

    x = jax.random.normal(k1, (B, C, H, W), jnp.float32)
    target = jax.random.normal(k2, (B, C, H, W), jnp.float32)
    maskI = (jax.random.uniform(k3, (1, 1, H, W)) > 0.3).astype(jnp.float32)
    maskJ = (jax.random.uniform(k4, (1, 1, H, W)) > 0.3).astype(jnp.float32)
    mask = jax.random.uniform(k5, (1, 1, H, W), dtype=jnp.float32)

    mod = HistLoss(strength, x, target, nbins, maskI, maskJ, mask)

    out = mod.forward(x)
    jax.block_until_ready(out)
    assert out.shape == x.shape and bool(jnp.all(out == x)), "forward must be identity"

    # --- check the tiled masked-histogram kernel against a pure-JAX reference ---
    Jf = target.reshape(C, H * W).astype(jnp.float32)
    mJf = maskJ.reshape(1, H * W).astype(jnp.float32)
    hist_k, mnJ, mxJ = masked_histogram(Jf, mJf, nbins)
    jax.block_until_ready(hist_k)
    scale = nbins / jnp.maximum(mxJ - mnJ, 1e-12)
    binf = jnp.clip(jnp.floor((Jf - mnJ) * scale), 0.0, nbins - 1.0)
    binf = jnp.where(mJf > 0.0, binf, -1.0)
    hist_ref = jnp.sum(
        (binf[:, :, None] == jnp.arange(nbins, dtype=jnp.float32)[None, None, :])
        .astype(jnp.float32), axis=1)
    assert bool(jnp.max(jnp.abs(hist_k - hist_ref)) <= 1e-3), "histogram mismatch"
    # Per-channel mass: each channel must count exactly the masked pixels.
    assert bool(jnp.allclose(jnp.sum(hist_k, axis=1),
                             jnp.full((C,), jnp.sum(mJf)))), "histogram mass mismatch"

    loss = mod.hist_hook()
    jax.block_until_ready(loss)
    assert bool(jnp.isfinite(loss)), "loss must be finite"

    # --- reference check of the remap + MSE path ---
    of = out.reshape(C, -1)
    mflat = mask.reshape(1, -1)
    of_masked = of[:, mod._keep] * mflat[:, mod._keep]
    remap_ref = _ref_remap_hist(of_masked, mod.hisJ)
    loss_ref = jnp.mean((of_masked - remap_ref) ** 2) * strength
    assert abs(float(loss) - float(loss_ref)) <= 1e-4 * max(1.0, abs(float(loss_ref))), (
        float(loss), float(loss_ref))

    print("KERNEL_OK")
</pallas_src>

<mosaic_0001>
module attributes {stable_mosaic.version = 11 : i64} {
  func.func @_masked_hist_kernel(%arg0: i32, %arg1: i32, %arg2: memref<16x256xf32, #tpu.memory_space<vmem>>, %arg3: memref<1x256xf32, #tpu.memory_space<vmem>>, %arg4: memref<16x1xf32, #tpu.memory_space<vmem>>, %arg5: memref<16x1xf32, #tpu.memory_space<vmem>>, %arg6: memref<512x1xf32, #tpu.memory_space<vmem>>) attributes {dimension_semantics = [#tpu.dimension_semantics<parallel>, #tpu.dimension_semantics<arbitrary>], iteration_bounds = array<i64: 1, 1>, scalar_prefetch = 0 : i64, scratch_operands = 0 : i64, tpu.core_type = #tpu.core_type<tc>, window_params = [{transform_indices = @transform_0, window_bounds = array<i64: 16, 256>}, {transform_indices = @transform_1, window_bounds = array<i64: 1, 256>}, {transform_indices = @transform_2, window_bounds = array<i64: 16, 1>}, {transform_indices = @transform_3, window_bounds = array<i64: 16, 1>}, {transform_indices = @transform_4, window_bounds = array<i64: 512, 1>}]} {
    %c0_i32 = arith.constant 0 : i32
    %0 = arith.cmpi eq, %arg1, %c0_i32 : i32
    %1 = arith.extui %0 : i1 to i32
    %c0_i32_0 = arith.constant 0 : i32
    %2 = arith.cmpi ne, %1, %c0_i32_0 : i32
    scf.if %2 {
      %cst_49 = arith.constant 0.000000e+00 : f32
      %191 = vector.broadcast %cst_49 : f32 to vector<512x1xf32>
      %c0_50 = arith.constant 0 : index
      %c0_51 = arith.constant 0 : index
      %192 = vector.load %arg6[%c0_50, %c0_51] : memref<512x1xf32, #tpu.memory_space<vmem>>, vector<512x1xf32>
      tpu.vector_store %arg6[%c0_50, %c0_51], %191 {strides = array<i32>} : memref<512x1xf32, #tpu.memory_space<vmem>>, vector<512x1xf32>,
    } else {
    }
    %c0 = arith.constant 0 : index
    %c0_1 = arith.constant 0 : index
    %3 = vector.load %arg2[%c0, %c0_1] : memref<16x256xf32, #tpu.memory_space<vmem>>, vector<16x256xf32>
    %c0_2 = arith.constant 0 : index
    %c0_3 = arith.constant 0 : index
    %4 = vector.load %arg3[%c0_2, %c0_3] : memref<1x256xf32, #tpu.memory_space<vmem>>, vector<1x256xf32>
    %c0_4 = arith.constant 0 : index
    %c0_5 = arith.constant 0 : index
    %5 = vector.load %arg4[%c0_4, %c0_5] : memref<16x1xf32, #tpu.memory_space<vmem>>, vector<16x1xf32>
    %c0_6 = arith.constant 0 : index
    %c0_7 = arith.constant 0 : index
    %6 = vector.load %arg5[%c0_6, %c0_7] : memref<16x1xf32, #tpu.memory_space<vmem>>, vector<16x1xf32>
    %7 = vector.broadcast %5 : vector<16x1xf32> to vector<16x256xf32>
    %8 = arith.subf %3, %7 : vector<16x256xf32>
    %9 = vector.broadcast %6 : vector<16x1xf32> to vector<16x256xf32>
    %10 = arith.mulf %8, %9 : vector<16x256xf32>
    %11 = math.floor %10 : vector<16x256xf32>
    %cst = arith.constant 0.000000e+00 : f32
    %cst_8 = arith.constant 3.100000e+01 : f32
    %12 = vector.broadcast %cst : f32 to vector<16x256xf32>
    %13 = arith.maximumf %12, %11 : vector<16x256xf32>
    %14 = vector.broadcast %cst_8 : f32 to vector<16x256xf32>
    %15 = arith.minimumf %14, %13 : vector<16x256xf32>
    %cst_9 = arith.constant 0.000000e+00 : f32
    %16 = vector.broadcast %cst_9 : f32 to vector<1x256xf32>
    %17 = arith.cmpf ogt, %4, %16 : vector<1x256xf32>
    %cst_10 = arith.constant -1.000000e+00 : f32
    %18 = vector.shape_cast %17 : vector<1x256xi1> to vector<1x256xi1>
    %19 = vector.broadcast %18 : vector<1x256xi1> to vector<16x256xi1>
    %20 = vector.broadcast %cst_10 : f32 to vector<16x256xf32>
    %21 = arith.select %19, %15, %20 : vector<16x256xi1>, vector<16x256xf32>
    %22 = arith.truncf %21 : vector<16x256xf32> to vector<16x256xbf16>
    %cst_11 = arith.constant 0.000000e+00 : bf16
    %23 = vector.broadcast %cst_11 : bf16 to vector<16x256xbf16>
    %24 = arith.cmpf oge, %22, %23 : vector<16x256xbf16>
    %25 = arith.extui %24 : vector<16x256xi1> to vector<16x256xi32>
    %26 = arith.sitofp %25 : vector<16x256xi32> to vector<16x256xf32>
    %27 = arith.truncf %26 : vector<16x256xf32> to vector<16x256xbf16>
    %cst_12 = arith.constant 1.000000e+00 : bf16
    %28 = vector.broadcast %cst_12 : bf16 to vector<16x256xbf16>
    %29 = arith.cmpf oge, %22, %28 : vector<16x256xbf16>
    %30 = arith.extui %29 : vector<16x256xi1> to vector<16x256xi32>
    %31 = arith.sitofp %30 : vector<16x256xi32> to vector<16x256xf32>
    %32 = arith.truncf %31 : vector<16x256xf32> to vector<16x256xbf16>
    %cst_13 = arith.constant 2.000000e+00 : bf16
    %33 = vector.broadcast %cst_13 : bf16 to vector<16x256xbf16>
    %34 = arith.cmpf oge, %22, %33 : vector<16x256xbf16>
    %35 = arith.extui %34 : vector<16x256xi1> to vector<16x256xi32>
    %36 = arith.sitofp %35 : vector<16x256xi32> to vector<16x256xf32>
    %37 = arith.truncf %36 : vector<16x256xf32> to vector<16x256xbf16>
    %cst_14 = arith.constant 3.000000e+00 : bf16
    %38 = vector.broadcast %cst_14 : bf16 to vector<16x256xbf16>
    %39 = arith.cmpf oge, %22, %38 : vector<16x256xbf16>
    %40 = arith.extui %39 : vector<16x256xi1> to vector<16x256xi32>
    %41 = arith.sitofp %40 : vector<16x256xi32> to vector<16x256xf32>
    %42 = arith.truncf %41 : vector<16x256xf32> to vector<16x256xbf16>
    %cst_15 = arith.constant 4.000000e+00 : bf16
    %43 = vector.broadcast %cst_15 : bf16 to vector<16x256xbf16>
    %44 = arith.cmpf oge, %22, %43 : vector<16x256xbf16>
    %45 = arith.extui %44 : vector<16x256xi1> to vector<16x256xi32>
    %46 = arith.sitofp %45 : vector<16x256xi32> to vector<16x256xf32>
    %47 = arith.truncf %46 : vector<16x256xf32> to vector<16x256xbf16>
    %cst_16 = arith.constant 5.000000e+00 : bf16
    %48 = vector.broadcast %cst_16 : bf16 to vector<16x256xbf16>
    %49 = arith.cmpf oge, %22, %48 : vector<16x256xbf16>
    %50 = arith.extui %49 : vector<16x256xi1> to vector<16x256xi32>
    %51 = arith.sitofp %50 : vector<16x256xi32> to vector<16x256xf32>
    %52 = arith.truncf %51 : vector<16x256xf32> to vector<16x256xbf16>
    %cst_17 = arith.constant 6.000000e+00 : bf16
    %53 = vector.broadcast %cst_17 : bf16 to vector<16x256xbf16>
    %54 = arith.cmpf oge, %22, %53 : vector<16x256xbf16>
    %55 = arith.extui %54 : vector<16x256xi1> to vector<16x256xi32>
    %56 = arith.sitofp %55 : vector<16x256xi32> to vector<16x256xf32>
    %57 = arith.truncf %56 : vector<16x256xf32> to vector<16x256xbf16>
    %cst_18 = arith.constant 7.000000e+00 : bf16
    %58 = vector.broadcast %cst_18 : bf16 to vector<16x256xbf16>
    %59 = arith.cmpf oge, %22, %58 : vector<16x256xbf16>
    %60 = arith.extui %59 : vector<16x256xi1> to vector<16x256xi32>
    %61 = arith.sitofp %60 : vector<16x256xi32> to vector<16x256xf32>
    %62 = arith.truncf %61 : vector<16x256xf32> to vector<16x256xbf16>
    %cst_19 = arith.constant 8.000000e+00 : bf16
    %63 = vector.broadcast %cst_19 : bf16 to vector<16x256xbf16>
    %64 = arith.cmpf oge, %22, %63 : vector<16x256xbf16>
    %65 = arith.extui %64 : vector<16x256xi1> to vector<16x256xi32>
    %66 = arith.sitofp %65 : vector<16x256xi32> to vector<16x256xf32>
    %67 = arith.truncf %66 : vector<16x256xf32> to vector<16x256xbf16>
    %cst_20 = arith.constant 9.000000e+00 : bf16
    %68 = vector.broadcast %cst_20 : bf16 to vector<16x256xbf16>
    %69 = arith.cmpf oge, %22, %68 : vector<16x256xbf16>
    %70 = arith.extui %69 : vector<16x256xi1> to vector<16x256xi32>
    %71 = arith.sitofp %70 : vector<16x256xi32> to vector<16x256xf32>
    %72 = arith.truncf %71 : vector<16x256xf32> to vector<16x256xbf16>
    %cst_21 = arith.constant 1.000000e+01 : bf16
    %73 = vector.broadcast %cst_21 : bf16 to vector<16x256xbf16>
    %74 = arith.cmpf oge, %22, %73 : vector<16x256xbf16>
    %75 = arith.extui %74 : vector<16x256xi1> to vector<16x256xi32>
    %76 = arith.sitofp %75 : vector<16x256xi32> to vector<16x256xf32>
    %77 = arith.truncf %76 : vector<16x256xf32> to vector<16x256xbf16>
    %cst_22 = arith.constant 1.100000e+01 : bf16
    %78 = vector.broadcast %cst_22 : bf16 to vector<16x256xbf16>
    %79 = arith.cmpf oge, %22, %78 : vector<16x256xbf16>
    %80 = arith.extui %79 : vector<16x256xi1> to vector<16x256xi32>
    %81 = arith.sitofp %80 : vector<16x256xi32> to vector<16x256xf32>
    %82 = arith.truncf %81 : vector<16x256xf32> to vector<16x256xbf16>
    %cst_23 = arith.constant 1.200000e+01 : bf16
    %83 = vector.broadcast %cst_23 : bf16 to vector<16x256xbf16>
    %84 = arith.cmpf oge, %22, %83 : vector<16x256xbf16>
    %85 = arith.extui %84 : vector<16x256xi1> to vector<16x256xi32>
    %86 = arith.sitofp %85 : vector<16x256xi32> to vector<16x256xf32>
    %87 = arith.truncf %86 : vector<16x256xf32> to vector<16x256xbf16>
    %cst_24 = arith.constant 1.300000e+01 : bf16
    %88 = vector.broadcast %cst_24 : bf16 to vector<16x256xbf16>
    %89 = arith.cmpf oge, %22, %88 : vector<16x256xbf16>
    %90 = arith.extui %89 : vector<16x256xi1> to vector<16x256xi32>
    %91 = arith.sitofp %90 : vector<16x256xi32> to vector<16x256xf32>
    %92 = arith.truncf %91 : vector<16x256xf32> to vector<16x256xbf16>
    %cst_25 = arith.constant 1.400000e+01 : bf16
    %93 = vector.broadcast %cst_25 : bf16 to vector<16x256xbf16>
    %94 = arith.cmpf oge, %22, %93 : vector<16x256xbf16>
    %95 = arith.extui %94 : vector<16x256xi1> to vector<16x256xi32>
    %96 = arith.sitofp %95 : vector<16x256xi32> to vector<16x256xf32>
    %97 = arith.truncf %96 : vector<16x256xf32> to vector<16x256xbf16>
    %cst_26 = arith.constant 1.500000e+01 : bf16
    %98 = vector.broadcast %cst_26 : bf16 to vector<16x256xbf16>
    %99 = arith.cmpf oge, %22, %98 : vector<16x256xbf16>
    %100 = arith.extui %99 : vector<16x256xi1> to vector<16x256xi32>
    %101 = arith.sitofp %100 : vector<16x256xi32> to vector<16x256xf32>
    %102 = arith.truncf %101 : vector<16x256xf32> to vector<16x256xbf16>
    %cst_27 = arith.constant 1.600000e+01 : bf16
    %103 = vector.broadcast %cst_27 : bf16 to vector<16x256xbf16>
    %104 = arith.cmpf oge, %22, %103 : vector<16x256xbf16>
    %105 = arith.extui %104 : vector<16x256xi1> to vector<16x256xi32>
    %106 = arith.sitofp %105 : vector<16x256xi32> to vector<16x256xf32>
    %107 = arith.truncf %106 : vector<16x256xf32> to vector<16x256xbf16>
    %cst_28 = arith.constant 1.700000e+01 : bf16
    %108 = vector.broadcast %cst_28 : bf16 to vector<16x256xbf16>
    %109 = arith.cmpf oge, %22, %108 : vector<16x256xbf16>
    %110 = arith.extui %109 : vector<16x256xi1> to vector<16x256xi32>
    %111 = arith.sitofp %110 : vector<16x256xi32> to vector<16x256xf32>
    %112 = arith.truncf %111 : vector<16x256xf32> to vector<16x256xbf16>
    %cst_29 = arith.constant 1.800000e+01 : bf16
    %113 = vector.broadcast %cst_29 : bf16 to vector<16x256xbf16>
    %114 = arith.cmpf oge, %22, %113 : vector<16x256xbf16>
    %115 = arith.extui %114 : vector<16x256xi1> to vector<16x256xi32>
    %116 = arith.sitofp %115 : vector<16x256xi32> to vector<16x256xf32>
    %117 = arith.truncf %116 : vector<16x256xf32> to vector<16x256xbf16>
    %cst_30 = arith.constant 1.900000e+01 : bf16
    %118 = vector.broadcast %cst_30 : bf16 to vector<16x256xbf16>
    %119 = arith.cmpf oge, %22, %118 : vector<16x256xbf16>
    %120 = arith.extui %119 : vector<16x256xi1> to vector<16x256xi32>
    %121 = arith.sitofp %120 : vector<16x256xi32> to vector<16x256xf32>
    %122 = arith.truncf %121 : vector<16x256xf32> to vector<16x256xbf16>
    %cst_31 = arith.constant 2.000000e+01 : bf16
    %123 = vector.broadcast %cst_31 : bf16 to vector<16x256xbf16>
    %124 = arith.cmpf oge, %22, %123 : vector<16x256xbf16>
    %125 = arith.extui %124 : vector<16x256xi1> to vector<16x256xi32>
    %126 = arith.sitofp %125 : vector<16x256xi32> to vector<16x256xf32>
    %127 = arith.truncf %126 : vector<16x256xf32> to vector<16x256xbf16>
    %cst_32 = arith.constant 2.100000e+01 : bf16
    %128 = vector.broadcast %cst_32 : bf16 to vector<16x256xbf16>
    %129 = arith.cmpf oge, %22, %128 : vector<16x256xbf16>
    %130 = arith.extui %129 : vector<16x256xi1> to vector<16x256xi32>
    %131 = arith.sitofp %130 : vector<16x256xi32> to vector<16x256xf32>
    %132 = arith.truncf %131 : vector<16x256xf32> to vector<16x256xbf16>
    %cst_33 = arith.constant 2.200000e+01 : bf16
    %133 = vector.broadcast %cst_33 : bf16 to vector<16x256xbf16>
    %134 = arith.cmpf oge, %22, %133 : vector<16x256xbf16>
    %135 = arith.extui %134 : vector<16x256xi1> to vector<16x256xi32>
    %136 = arith.sitofp %135 : vector<16x256xi32> to vector<16x256xf32>
    %137 = arith.truncf %136 : vector<16x256xf32> to vector<16x256xbf16>
    %cst_34 = arith.constant 2.300000e+01 : bf16
    %138 = vector.broadcast %cst_34 : bf16 to vector<16x256xbf16>
    %139 = arith.cmpf oge, %22, %138 : vector<16x256xbf16>
    %140 = arith.extui %139 : vector<16x256xi1> to vector<16x256xi32>
    %141 = arith.sitofp %140 : vector<16x256xi32> to vector<16x256xf32>
    %142 = arith.truncf %141 : vector<16x256xf32> to vector<16x256xbf16>
    %cst_35 = arith.constant 2.400000e+01 : bf16
    %143 = vector.broadcast %cst_35 : bf16 to vector<16x256xbf16>
    %144 = arith.cmpf oge, %22, %143 : vector<16x256xbf16>
    %145 = arith.extui %144 : vector<16x256xi1> to vector<16x256xi32>
    %146 = arith.sitofp %145 : vector<16x256xi32> to vector<16x256xf32>
    %147 = arith.truncf %146 : vector<16x256xf32> to vector<16x256xbf16>
    %cst_36 = arith.constant 2.500000e+01 : bf16
    %148 = vector.broadcast %cst_36 : bf16 to vector<16x256xbf16>
    %149 = arith.cmpf oge, %22, %148 : vector<16x256xbf16>
    %150 = arith.extui %149 : vector<16x256xi1> to vector<16x256xi32>
    %151 = arith.sitofp %150 : vector<16x256xi32> to vector<16x256xf32>
    %152 = arith.truncf %151 : vector<16x256xf32> to vector<16x256xbf16>
    %cst_37 = arith.constant 2.600000e+01 : bf16
    %153 = vector.broadcast %cst_37 : bf16 to vector<16x256xbf16>
    %154 = arith.cmpf oge, %22, %153 : vector<16x256xbf16>
    %155 = arith.extui %154 : vector<16x256xi1> to vector<16x256xi32>
    %156 = arith.sitofp %155 : vector<16x256xi32> to vector<16x256xf32>
    %157 = arith.truncf %156 : vector<16x256xf32> to vector<16x256xbf16>
    %cst_38 = arith.constant 2.700000e+01 : bf16
    %158 = vector.broadcast %cst_38 : bf16 to vector<16x256xbf16>
    %159 = arith.cmpf oge, %22, %158 : vector<16x256xbf16>
    %160 = arith.extui %159 : vector<16x256xi1> to vector<16x256xi32>
    %161 = arith.sitofp %160 : vector<16x256xi32> to vector<16x256xf32>
    %162 = arith.truncf %161 : vector<16x256xf32> to vector<16x256xbf16>
    %cst_39 = arith.constant 2.800000e+01 : bf16
    %163 = vector.broadcast %cst_39 : bf16 to vector<16x256xbf16>
    %164 = arith.cmpf oge, %22, %163 : vector<16x256xbf16>
    %165 = arith.extui %164 : vector<16x256xi1> to vector<16x256xi32>
    %166 = arith.sitofp %165 : vector<16x256xi32> to vector<16x256xf32>
    %167 = arith.truncf %166 : vector<16x256xf32> to vector<16x256xbf16>
    %cst_40 = arith.constant 2.900000e+01 : bf16
    %168 = vector.broadcast %cst_40 : bf16 to vector<16x256xbf16>
    %169 = arith.cmpf oge, %22, %168 : vector<16x256xbf16>
    %170 = arith.extui %169 : vector<16x256xi1> to vector<16x256xi32>
    %171 = arith.sitofp %170 : vector<16x256xi32> to vector<16x256xf32>
    %172 = arith.truncf %171 : vector<16x256xf32> to vector<16x256xbf16>
    %cst_41 = arith.constant 3.000000e+01 : bf16
    %173 = vector.broadcast %cst_41 : bf16 to vector<16x256xbf16>
    %174 = arith.cmpf oge, %22, %173 : vector<16x256xbf16>
    %175 = arith.extui %174 : vector<16x256xi1> to vector<16x256xi32>
    %176 = arith.sitofp %175 : vector<16x256xi32> to vector<16x256xf32>
    %177 = arith.truncf %176 : vector<16x256xf32> to vector<16x256xbf16>
    %cst_42 = arith.constant 3.100000e+01 : bf16
    %178 = vector.broadcast %cst_42 : bf16 to vector<16x256xbf16>
    %179 = arith.cmpf oge, %22, %178 : vector<16x256xbf16>
    %180 = arith.extui %179 : vector<16x256xi1> to vector<16x256xi32>
    %181 = arith.sitofp %180 : vector<16x256xi32> to vector<16x256xf32>
    %182 = arith.truncf %181 : vector<16x256xf32> to vector<16x256xbf16>
    %183 = tpu.concatenate %27, %32, %37, %42, %47, %52, %57, %62, %67, %72, %77, %82, %87, %92, %97, %102 in 0 : vector<16x256xbf16>, vector<16x256xbf16>, vector<16x256xbf16>, vector<16x256xbf16>, vector<16x256xbf16>, vector<16x256xbf16>, vector<16x256xbf16>, vector<16x256xbf16>, vector<16x256xbf16>, vector<16x256xbf16>, vector<16x256xbf16>, vector<16x256xbf16>, vector<16x256xbf16>, vector<16x256xbf16>, vector<16x256xbf16>, vector<16x256xbf16> -> vector<256x256xbf16>
    %184 = tpu.concatenate %107, %112, %117, %122, %127, %132, %137, %142, %147, %152, %157, %162, %167, %172, %177, %182 in 0 : vector<16x256xbf16>, vector<16x256xbf16>, vector<16x256xbf16>, vector<16x256xbf16>, vector<16x256xbf16>, vector<16x256xbf16>, vector<16x256xbf16>, vector<16x256xbf16>, vector<16x256xbf16>, vector<16x256xbf16>, vector<16x256xbf16>, vector<16x256xbf16>, vector<16x256xbf16>, vector<16x256xbf16>, vector<16x256xbf16>, vector<16x256xbf16> -> vector<256x256xbf16>
    %185 = tpu.concatenate %183, %184 in 0 : vector<256x256xbf16>, vector<256x256xbf16> -> vector<512x256xbf16>
    %cst_43 = arith.constant 1.000000e+00 : bf16
    %186 = vector.broadcast %cst_43 : bf16 to vector<256x1xbf16>
    %c0_44 = arith.constant 0 : index
    %c0_45 = arith.constant 0 : index
    %187 = vector.load %arg6[%c0_44, %c0_45] : memref<512x1xf32, #tpu.memory_space<vmem>>, vector<512x1xf32>
    %cst_46 = arith.constant dense<0.000000e+00> : vector<512x1xf32>
    %188 = tpu.matmul %185, %186, %cst_46 {dimension_numbers = #tpu.dot_dimension_numbers<[1], [0], [0], [1], [0, 0, 1, 1], [], []>} : vector<512x256xbf16>, vector<256x1xbf16>, vector<512x1xf32> -> vector<512x1xf32>
    %189 = arith.addf %187, %188 : vector<512x1xf32>
    %c0_47 = arith.constant 0 : index
    %c0_48 = arith.constant 0 : index
    %190 = vector.load %arg6[%c0_47, %c0_48] : memref<512x1xf32, #tpu.memory_space<vmem>>, vector<512x1xf32>
    tpu.vector_store %arg6[%c0_47, %c0_48], %189 {strides = array<i32>} : memref<512x1xf32, #tpu.memory_space<vmem>>, vector<512x1xf32>,
    return
  }
  func.func @transform_0(%arg0: i32, %arg1: i32) -> (i32, i32) {
    %c0_i32 = arith.constant 0 : i32
    return %arg0, %arg1 : i32, i32
  }
  func.func @transform_1(%arg0: i32, %arg1: i32) -> (i32, i32) {
    %c0_i32 = arith.constant 0 : i32
    %c0_i32_0 = arith.constant 0 : i32
    return %c0_i32, %arg1 : i32, i32
  }
  func.func @transform_2(%arg0: i32, %arg1: i32) -> (i32, i32) {
    %c0_i32 = arith.constant 0 : i32
    %c0_i32_0 = arith.constant 0 : i32
    return %arg0, %c0_i32 : i32, i32
  }
  func.func @transform_3(%arg0: i32, %arg1: i32) -> (i32, i32) {
    %c0_i32 = arith.constant 0 : i32
    %c0_i32_0 = arith.constant 0 : i32
    return %arg0, %c0_i32 : i32, i32
  }
  func.func @transform_4(%arg0: i32, %arg1: i32) -> (i32, i32) {
    %c0_i32 = arith.constant 0 : i32
    %c0_i32_0 = arith.constant 0 : i32
    return %arg0, %c0_i32 : i32, i32
  }
}

</mosaic_0001>

<llo_original>
// kernel: tpu_custom_call.1
$region0: #{tpu_custom_call.1}
  #allocation0 [shape = 'u32[]', space=smem, size = 0x4, offset = 0x4, fixed_abs, tag = 'smem constant byte address 0x4 - core index']
  #allocation1 [shape = 'u32[72,128]{1,0:T(1,128)}', space=vmem, size = 0x9000, scoped, tag = 'internal scratch']
  %s0 = inlined_call_operand.vmem [shape: f32[16,256], index: 0, kind: input, shape index: {}]
  %s1 = inlined_call_operand.hbm [shape: f32[1,256], index: 1, kind: input, shape index: {}]
  %s2 = inlined_call_operand.vmem [shape: f32[16,1], index: 2, kind: input, shape index: {}]
  %s3 = inlined_call_operand.vmem [shape: f32[16,1], index: 3, kind: input, shape index: {}]
  %s4 = inlined_call_operand.vmem [shape: f32[512,1], index: 4, kind: output, shape index: {}]
  %s5 = sld [smem:[#allocation0]]
  $region34: #{tpu_custom_call.1} parent=0
    _
  %s7 = ssub.s32 1, %s5
  %s8 = scalar_select 0, %s7, %s5
  $region1: #{tpu_custom_call.1} parent=0
    #allocation2 [shape = 'u8[1024]{0}', space=vmem, size = 0x400, scoped, tag = 'input window, operand 1, single buffered']
    #allocation3 [shape = 's32[1]{0}', space=sflag, size = 0x4, scoped, tag = 'scoped memory for tpu_custom_call.1']
    %9 = vsyncpa [#allocation3], 0
    // Predicated region
    $region2: #{tpu_custom_call.1} parent=1 // pred_check
      _
    $region3: #{tpu_custom_call.1} parent=1 // pred_check_branch
      %11 = sbr.rel (0) target = $region5
    $region4: #{tpu_custom_call.1} parent=1 // pred_region
      _
    $region5: #{tpu_custom_call.1} parent=1 // pred_fallthru
      _
    // Predicated region
    $region6: #{tpu_custom_call.1} parent=1 // pred_check
      _
    $region7: #{tpu_custom_call.1} parent=1 // pred_check_branch
      %13 = sbr.rel (0) target = $region9
    $region8: #{tpu_custom_call.1} parent=1 // pred_region
      %15 = vsyncadd [#allocation3], 0
      %s17 = sshll.u32 %s1, 4
      %s18 = int_to_ptr.hbm [resolvable:$true] %s17
      %s19 = sshll.u32 [#allocation2], 4
      %s20 = int_to_ptr.vmem [resolvable:$true] %s19
      %22 = dma.hbm_to_vmem [thread:$0]  %s18, 32, %s20, [#allocation3]
    $region9: #{tpu_custom_call.1} parent=1 // pred_fallthru
      _
    // Predicated region
    $region10: #{tpu_custom_call.1} parent=1 // pred_check
      _
    $region11: #{tpu_custom_call.1} parent=1 // pred_check_branch
      %24 = sbr.rel (0) target = $region13
    $region12: #{tpu_custom_call.1} parent=1 // pred_region
      _
    $region13: #{tpu_custom_call.1} parent=1 // pred_fallthru
      _
    // Predicated region
    $region14: #{tpu_custom_call.1} parent=1 // pred_check
      _
    $region15: #{tpu_custom_call.1} parent=1 // pred_check_branch
      %26 = sbr.rel (0) target = $region17
    $region16: #{tpu_custom_call.1} parent=1 // pred_region
      _
    $region17: #{tpu_custom_call.1} parent=1 // pred_fallthru
      _
    // Predicated region
    $region18: #{tpu_custom_call.1} parent=1 // pred_check
      _
    $region19: #{tpu_custom_call.1} parent=1 // pred_check_branch
      %28 = sbr.rel (0) target = $region21
    $region20: #{tpu_custom_call.1} parent=1 // pred_region
      %30 = dma.done [#allocation3], 32
    $region21: #{tpu_custom_call.1} parent=1 // pred_fallthru
      _
    %p32 = scmp.eq.s32.totalorder 0, 0
    // Predicated region
    $region22: #{tpu_custom_call.1} parent=1 // pred_check
      %p33 = pneg %p32
    $region23: #{tpu_custom_call.1} parent=1 // pred_check_branch
      %35 = sbr.rel (%p33) target = $region25
    $region24: #{tpu_custom_call.1} parent=1 // pred_region
      %vm36 = vcmask 7168
      %37 = vst.msk [vmem:[%s4] sm:$0xff] %vm36, 0.0
      %38 = vst.msk [vmem:[%s4 + $0x8] sm:$0xff] %vm36, 0.0
      %39 = vst.msk [vmem:[%s4 + $0x10] sm:$0xff] %vm36, 0.0
      %40 = vst.msk [vmem:[%s4 + $0x18] sm:$0xff] %vm36, 0.0
      %41 = vst.msk [vmem:[%s4 + $0x20] sm:$0xff] %vm36, 0.0
      %42 = vst.msk [vmem:[%s4 + $0x28] sm:$0xff] %vm36, 0.0
      %43 = vst.msk [vmem:[%s4 + $0x30] sm:$0xff] %vm36, 0.0
      %44 = vst.msk [vmem:[%s4 + $0x38] sm:$0xff] %vm36, 0.0
      %45 = vst.msk [vmem:[%s4 + $0x40] sm:$0xff] %vm36, 0.0
      %46 = vst.msk [vmem:[%s4 + $0x48] sm:$0xff] %vm36, 0.0
      %47 = vst.msk [vmem:[%s4 + $0x50] sm:$0xff] %vm36, 0.0
      %48 = vst.msk [vmem:[%s4 + $0x58] sm:$0xff] %vm36, 0.0
      %49 = vst.msk [vmem:[%s4 + $0x60] sm:$0xff] %vm36, 0.0
      %50 = vst.msk [vmem:[%s4 + $0x68] sm:$0xff] %vm36, 0.0
      %51 = vst.msk [vmem:[%s4 + $0x70] sm:$0xff] %vm36, 0.0
      %52 = vst.msk [vmem:[%s4 + $0x78] sm:$0xff] %vm36, 0.0
      %53 = vst.msk [vmem:[%s4 + $0x80] sm:$0xff] %vm36, 0.0
      %54 = vst.msk [vmem:[%s4 + $0x88] sm:$0xff] %vm36, 0.0
      %55 = vst.msk [vmem:[%s4 + $0x90] sm:$0xff] %vm36, 0.0
      %56 = vst.msk [vmem:[%s4 + $0x98] sm:$0xff] %vm36, 0.0
      %57 = vst.msk [vmem:[%s4 + $0xa0] sm:$0xff] %vm36, 0.0
      %58 = vst.msk [vmem:[%s4 + $0xa8] sm:$0xff] %vm36, 0.0
      %59 = vst.msk [vmem:[%s4 + $0xb0] sm:$0xff] %vm36, 0.0
      %60 = vst.msk [vmem:[%s4 + $0xb8] sm:$0xff] %vm36, 0.0
      %61 = vst.msk [vmem:[%s4 + $0xc0] sm:$0xff] %vm36, 0.0
      %62 = vst.msk [vmem:[%s4 + $0xc8] sm:$0xff] %vm36, 0.0
      %63 = vst.msk [vmem:[%s4 + $0xd0] sm:$0xff] %vm36, 0.0
      %64 = vst.msk [vmem:[%s4 + $0xd8] sm:$0xff] %vm36, 0.0
      %65 = vst.msk [vmem:[%s4 + $0xe0] sm:$0xff] %vm36, 0.0
      %66 = vst.msk [vmem:[%s4 + $0xe8] sm:$0xff] %vm36, 0.0
      %67 = vst.msk [vmem:[%s4 + $0xf0] sm:$0xff] %vm36, 0.0
      %68 = vst.msk [vmem:[%s4 + $0xf8] sm:$0xff] %vm36, 0.0
      %69 = vst.msk [vmem:[%s4 + $0x100] sm:$0xff] %vm36, 0.0
      %70 = vst.msk [vmem:[%s4 + $0x108] sm:$0xff] %vm36, 0.0
      %71 = vst.msk [vmem:[%s4 + $0x110] sm:$0xff] %vm36, 0.0
      %72 = vst.msk [vmem:[%s4 + $0x118] sm:$0xff] %vm36, 0.0
      %73 = vst.msk [vmem:[%s4 + $0x120] sm:$0xff] %vm36, 0.0
      %74 = vst.msk [vmem:[%s4 + $0x128] sm:$0xff] %vm36, 0.0
      %75 = vst.msk [vmem:[%s4 + $0x130] sm:$0xff] %vm36, 0.0
      %76 = vst.msk [vmem:[%s4 + $0x138] sm:$0xff] %vm36, 0.0
      %77 = vst.msk [vmem:[%s4 + $0x140] sm:$0xff] %vm36, 0.0
      %78 = vst.msk [vmem:[%s4 + $0x148] sm:$0xff] %vm36, 0.0
      %79 = vst.msk [vmem:[%s4 + $0x150] sm:$0xff] %vm36, 0.0
      %80 = vst.msk [vmem:[%s4 + $0x158] sm:$0xff] %vm36, 0.0
      %81 = vst.msk [vmem:[%s4 + $0x160] sm:$0xff] %vm36, 0.0
      %82 = vst.msk [vmem:[%s4 + $0x168] sm:$0xff] %vm36, 0.0
      %83 = vst.msk [vmem:[%s4 + $0x170] sm:$0xff] %vm36, 0.0
      %84 = vst.msk [vmem:[%s4 + $0x178] sm:$0xff] %vm36, 0.0
      %85 = vst.msk [vmem:[%s4 + $0x180] sm:$0xff] %vm36, 0.0
      %86 = vst.msk [vmem:[%s4 + $0x188] sm:$0xff] %vm36, 0.0
      %87 = vst.msk [vmem:[%s4 + $0x190] sm:$0xff] %vm36, 0.0
      %88 = vst.msk [vmem:[%s4 + $0x198] sm:$0xff] %vm36, 0.0
      %89 = vst.msk [vmem:[%s4 + $0x1a0] sm:$0xff] %vm36, 0.0
      %90 = vst.msk [vmem:[%s4 + $0x1a8] sm:$0xff] %vm36, 0.0
      %91 = vst.msk [vmem:[%s4 + $0x1b0] sm:$0xff] %vm36, 0.0
      %92 = vst.msk [vmem:[%s4 + $0x1b8] sm:$0xff] %vm36, 0.0
      %93 = vst.msk [vmem:[%s4 + $0x1c0] sm:$0xff] %vm36, 0.0
      %94 = vst.msk [vmem:[%s4 + $0x1c8] sm:$0xff] %vm36, 0.0
      %95 = vst.msk [vmem:[%s4 + $0x1d0] sm:$0xff] %vm36, 0.0
      %96 = vst.msk [vmem:[%s4 + $0x1d8] sm:$0xff] %vm36, 0.0
      %97 = vst.msk [vmem:[%s4 + $0x1e0] sm:$0xff] %vm36, 0.0
      %98 = vst.msk [vmem:[%s4 + $0x1e8] sm:$0xff] %vm36, 0.0
      %99 = vst.msk [vmem:[%s4 + $0x1f0] sm:$0xff] %vm36, 0.0
      %100 = vst.msk [vmem:[%s4 + $0x1f8] sm:$0xff] %vm36, 0.0
    $region25: #{tpu_custom_call.1} parent=1 // pred_fallthru
      _
    %v101 = vld [vmem:[%s0] sm:$0xff]
    %v102 = vld [vmem:[%s0 + $0x8] sm:$0xff]
    %v103 = vld [vmem:[%s0 + $0x10] sm:$0xff]
    %v104 = vld [vmem:[%s0 + $0x18] sm:$0xff]
    %v105 = vld [vmem:[#allocation2] sm:$0x3]
    %v106 = vld [vmem:[%s2] sm:$0xff]
    %v107 = vld [vmem:[%s2 + $0x8] sm:$0xff]
    %v108 = vld [vmem:[%s3] sm:$0xff]
    %v109 = vld [vmem:[%s3 + $0x8] sm:$0xff]
    %111 = vset.pattern.permute.xlu0 0
    %112 = vperm.xlu0 %111, %v106
    %v113 = vpop.permute.xlu0 %112
    %116 = vset.pattern.permute.xlu0 0
    %117 = vperm.xlu0 %116, %v107
    %v118 = vpop.permute.xlu0 %117
    %v120 = vsub.f32 %v101, %v113
    %v121 = vsub.f32 %v102, %v113
    %v122 = vsub.f32 %v103, %v118
    %v123 = vsub.f32 %v104, %v118
    %125 = vset.pattern.permute.xlu0 0
    %126 = vperm.xlu0 %125, %v108
    %v127 = vpop.permute.xlu0 %126
    %130 = vset.pattern.permute.xlu0 0
    %131 = vperm.xlu0 %130, %v109
    %v132 = vpop.permute.xlu0 %131
    %v134 = vmul.f32 %v120, %v127
    %v135 = vmul.f32 %v121, %v127
    %v136 = vmul.f32 %v122, %v132
    %v137 = vmul.f32 %v123, %v132
    %v138 = vfloor.f32 %v134
    %v139 = vfloor.f32 %v135
    %v140 = vfloor.f32 %v136
    %v141 = vfloor.f32 %v137
    %v142 = vmax.f32 %v138, 0.0
    %v143 = vmax.f32 %v139, 0.0
    %v144 = vmax.f32 %v140, 0.0
    %v145 = vmax.f32 %v141, 0.0
    %v146 = vmin.f32 %v142, 31.0
    %v147 = vmin.f32 %v143, 31.0
    %v148 = vmin.f32 %v144, 31.0
    %v149 = vmin.f32 %v145, 31.0
    %vm150 = vcmp.gt.f32.partialorder %v105, 0.0
    %v151 = vsel %vm150, 1, 0
    %v152 = vperm.slane %v151, 0
    %v153 = vperm.slane %v151, 1
    %vm154 = vcmp.eq.s32.totalorder %v152, 1
    %vm155 = vcmp.eq.s32.totalorder %v153, 1
    %v156 = vsel %vm154, %v146, -1.0
    %v157 = vsel %vm155, %v147, -1.0
    %v158 = vsel %vm154, %v148, -1.0
    %v159 = vsel %vm155, %v149, -1.0
    %v160 = vpack.c.bf16 %v157, %v156
    %v161 = vpack.c.bf16 %v159, %v158
    %v162 = vunpack.c.l.bf16 %v160
    %v163 = vunpack.c.h.bf16 %v160
    %v164 = vunpack.c.l.bf16 %v161
    %v165 = vunpack.c.h.bf16 %v161
    %vm166 = vcmp.ge.f32.partialorder %v162, 0.0
    %vm167 = vcmp.ge.f32.partialorder %v163, 0.0
    %vm168 = vcmp.ge.f32.partialorder %v164, 0.0
    %vm169 = vcmp.ge.f32.partialorder %v165, 0.0
    %v170 = vsel %vm166, 1, 0
    %v171 = vsel %vm167, 1, 0
    %v172 = vsel %vm168, 1, 0
    %v173 = vsel %vm169, 1, 0
    %v174 = vcvt.s32.f32 %v170
    %v175 = vcvt.s32.f32 %v171
    %v176 = vcvt.s32.f32 %v172
    %v177 = vcvt.s32.f32 %v173
    %v178 = vpack.c.bf16 %v175, %v174
    %v179 = vpack.c.bf16 %v177, %v176
    %vm180 = vcmp.ge.f32.partialorder %v162, 1.0
    %vm181 = vcmp.ge.f32.partialorder %v163, 1.0
    %vm182 = vcmp.ge.f32.partialorder %v164, 1.0
    %vm183 = vcmp.ge.f32.partialorder %v165, 1.0
    %v184 = vsel %vm180, 1, 0
    %v185 = vsel %vm181, 1, 0
    %v186 = vsel %vm182, 1, 0
    %v187 = vsel %vm183, 1, 0
    %v188 = vcvt.s32.f32 %v184
    %v189 = vcvt.s32.f32 %v185
    %v190 = vcvt.s32.f32 %v186
    %v191 = vcvt.s32.f32 %v187
    %v192 = vpack.c.bf16 %v189, %v188
    %v193 = vpack.c.bf16 %v191, %v190
    %vm194 = vcmp.ge.f32.partialorder %v162, 2.0
    %vm195 = vcmp.ge.f32.partialorder %v163, 2.0
    %vm196 = vcmp.ge.f32.partialorder %v164, 2.0
    %vm197 = vcmp.ge.f32.partialorder %v165, 2.0
    %v198 = vsel %vm194, 1, 0
    %v199 = vsel %vm195, 1, 0
    %v200 = vsel %vm196, 1, 0
    %v201 = vsel %vm197, 1, 0
    %v202 = vcvt.s32.f32 %v198
    %v203 = vcvt.s32.f32 %v199
    %v204 = vcvt.s32.f32 %v200
    %v205 = vcvt.s32.f32 %v201
    %v206 = vpack.c.bf16 %v203, %v202
    %v207 = vpack.c.bf16 %v205, %v204
    %vm208 = vcmp.ge.f32.partialorder %v162, 3.0
    %vm209 = vcmp.ge.f32.partialorder %v163, 3.0
    %vm210 = vcmp.ge.f32.partialorder %v164, 3.0
    %vm211 = vcmp.ge.f32.partialorder %v165, 3.0
    %v212 = vsel %vm208, 1, 0
    %v213 = vsel %vm209, 1, 0
    %v214 = vsel %vm210, 1, 0
    %v215 = vsel %vm211, 1, 0
    %v216 = vcvt.s32.f32 %v212
    %v217 = vcvt.s32.f32 %v213
    %v218 = vcvt.s32.f32 %v214
    %v219 = vcvt.s32.f32 %v215
    %v220 = vpack.c.bf16 %v217, %v216
    %v221 = vpack.c.bf16 %v219, %v218
    %vm222 = vcmp.ge.f32.partialorder %v162, 4.0
    %vm223 = vcmp.ge.f32.partialorder %v163, 4.0
    %vm224 = vcmp.ge.f32.partialorder %v164, 4.0
    %vm225 = vcmp.ge.f32.partialorder %v165, 4.0
    %v226 = vsel %vm222, 1, 0
    %v227 = vsel %vm223, 1, 0
    %v228 = vsel %vm224, 1, 0
    %v229 = vsel %vm225, 1, 0
    %v230 = vcvt.s32.f32 %v226
    %v231 = vcvt.s32.f32 %v227
    %v232 = vcvt.s32.f32 %v228
    %v233 = vcvt.s32.f32 %v229
    %v234 = vpack.c.bf16 %v231, %v230
    %v235 = vpack.c.bf16 %v233, %v232
    %vm236 = vcmp.ge.f32.partialorder %v162, 5.0
    %vm237 = vcmp.ge.f32.partialorder %v163, 5.0
    %vm238 = vcmp.ge.f32.partialorder %v164, 5.0
    %vm239 = vcmp.ge.f32.partialorder %v165, 5.0
    %v240 = vsel %vm236, 1, 0
    %v241 = vsel %vm237, 1, 0
    %v242 = vsel %vm238, 1, 0
    %v243 = vsel %vm239, 1, 0
    %v244 = vcvt.s32.f32 %v240
    %v245 = vcvt.s32.f32 %v241
    %v246 = vcvt.s32.f32 %v242
    %v247 = vcvt.s32.f32 %v243
    %v248 = vpack.c.bf16 %v245, %v244
    %v249 = vpack.c.bf16 %v247, %v246
    %vm250 = vcmp.ge.f32.partialorder %v162, 6.0
    %vm251 = vcmp.ge.f32.partialorder %v163, 6.0
    %vm252 = vcmp.ge.f32.partialorder %v164, 6.0
    %vm253 = vcmp.ge.f32.partialorder %v165, 6.0
    %v254 = vsel %vm250, 1, 0
    %v255 = vsel %vm251, 1, 0
    %v256 = vsel %vm252, 1, 0
    %v257 = vsel %vm253, 1, 0
    %v258 = vcvt.s32.f32 %v254
    %v259 = vcvt.s32.f32 %v255
    %v260 = vcvt.s32.f32 %v256
    %v261 = vcvt.s32.f32 %v257
    %v262 = vpack.c.bf16 %v259, %v258
    %v263 = vpack.c.bf16 %v261, %v260
    %vm264 = vcmp.ge.f32.partialorder %v162, 7.0
    %vm265 = vcmp.ge.f32.partialorder %v163, 7.0
    %vm266 = vcmp.ge.f32.partialorder %v164, 7.0
    %vm267 = vcmp.ge.f32.partialorder %v165, 7.0
    %v268 = vsel %vm264, 1, 0
    %v269 = vsel %vm265, 1, 0
    %v270 = vsel %vm266, 1, 0
    %v271 = vsel %vm267, 1, 0
    %v272 = vcvt.s32.f32 %v268
    %v273 = vcvt.s32.f32 %v269
    %v274 = vcvt.s32.f32 %v270
    %v275 = vcvt.s32.f32 %v271
    %v276 = vpack.c.bf16 %v273, %v272
    %v277 = vpack.c.bf16 %v275, %v274
    %vm278 = vcmp.ge.f32.partialorder %v162, 8.0
    %vm279 = vcmp.ge.f32.partialorder %v163, 8.0
    %vm280 = vcmp.ge.f32.partialorder %v164, 8.0
    %vm281 = vcmp.ge.f32.partialorder %v165, 8.0
    %v282 = vsel %vm278, 1, 0
    %v283 = vsel %vm279, 1, 0
    %v284 = vsel %vm280, 1, 0
    %v285 = vsel %vm281, 1, 0
    %v286 = vcvt.s32.f32 %v282
    %v287 = vcvt.s32.f32 %v283
    %v288 = vcvt.s32.f32 %v284
    %v289 = vcvt.s32.f32 %v285
    %v290 = vpack.c.bf16 %v287, %v286
    %v291 = vpack.c.bf16 %v289, %v288
    %vm292 = vcmp.ge.f32.partialorder %v162, 9.0
    %vm293 = vcmp.ge.f32.partialorder %v163, 9.0
    %vm294 = vcmp.ge.f32.partialorder %v164, 9.0
    %vm295 = vcmp.ge.f32.partialorder %v165, 9.0
    %v296 = vsel %vm292, 1, 0
    %v297 = vsel %vm293, 1, 0
    %v298 = vsel %vm294, 1, 0
    %v299 = vsel %vm295, 1, 0
    %v300 = vcvt.s32.f32 %v296
    %v301 = vcvt.s32.f32 %v297
    %v302 = vcvt.s32.f32 %v298
    %v303 = vcvt.s32.f32 %v299
    %v304 = vpack.c.bf16 %v301, %v300
    %v305 = vpack.c.bf16 %v303, %v302
    %vm306 = vcmp.ge.f32.partialorder %v162, 10.0
    %vm307 = vcmp.ge.f32.partialorder %v163, 10.0
    %vm308 = vcmp.ge.f32.partialorder %v164, 10.0
    %vm309 = vcmp.ge.f32.partialorder %v165, 10.0
    %v310 = vsel %vm306, 1, 0
    %v311 = vsel %vm307, 1, 0
    %v312 = vsel %vm308, 1, 0
    %v313 = vsel %vm309, 1, 0
    %v314 = vcvt.s32.f32 %v310
    %v315 = vcvt.s32.f32 %v311
    %v316 = vcvt.s32.f32 %v312
    %v317 = vcvt.s32.f32 %v313
    %v318 = vpack.c.bf16 %v315, %v314
    %v319 = vpack.c.bf16 %v317, %v316
    %vm320 = vcmp.ge.f32.partialorder %v162, 11.0
    %vm321 = vcmp.ge.f32.partialorder %v163, 11.0
    %vm322 = vcmp.ge.f32.partialorder %v164, 11.0
    %vm323 = vcmp.ge.f32.partialorder %v165, 11.0
    %v324 = vsel %vm320, 1, 0
    %v325 = vsel %vm321, 1, 0
    %v326 = vsel %vm322, 1, 0
    %v327 = vsel %vm323, 1, 0
    %v328 = vcvt.s32.f32 %v324
    %v329 = vcvt.s32.f32 %v325
    %v330 = vcvt.s32.f32 %v326
    %v331 = vcvt.s32.f32 %v327
    %v332 = vpack.c.bf16 %v329, %v328
    %v333 = vpack.c.bf16 %v331, %v330
    %vm334 = vcmp.ge.f32.partialorder %v162, 12.0
    %vm335 = vcmp.ge.f32.partialorder %v163, 12.0
    %vm336 = vcmp.ge.f32.partialorder %v164, 12.0
    %vm337 = vcmp.ge.f32.partialorder %v165, 12.0
    %v338 = vsel %vm334, 1, 0
    %v339 = vsel %vm335, 1, 0
    %v340 = vsel %vm336, 1, 0
    %v341 = vsel %vm337, 1, 0
    %v342 = vcvt.s32.f32 %v338
    %v343 = vcvt.s32.f32 %v339
    %v344 = vcvt.s32.f32 %v340
    %v345 = vcvt.s32.f32 %v341
    %v346 = vpack.c.bf16 %v343, %v342
    %v347 = vpack.c.bf16 %v345, %v344
    %vm348 = vcmp.ge.f32.partialorder %v162, 13.0
    %vm349 = vcmp.ge.f32.partialorder %v163, 13.0
    %vm350 = vcmp.ge.f32.partialorder %v164, 13.0
    %vm351 = vcmp.ge.f32.partialorder %v165, 13.0
    %v352 = vsel %vm348, 1, 0
    %v353 = vsel %vm349, 1, 0
    %v354 = vsel %vm350, 1, 0
    %v355 = vsel %vm351, 1, 0
    %v356 = vcvt.s32.f32 %v352
    %v357 = vcvt.s32.f32 %v353
    %v358 = vcvt.s32.f32 %v354
    %v359 = vcvt.s32.f32 %v355
    %v360 = vpack.c.bf16 %v357, %v356
    %v361 = vpack.c.bf16 %v359, %v358
    %vm362 = vcmp.ge.f32.partialorder %v162, 14.0
    %vm363 = vcmp.ge.f32.partialorder %v163, 14.0
    %vm364 = vcmp.ge.f32.partialorder %v164, 14.0
    %vm365 = vcmp.ge.f32.partialorder %v165, 14.0
    %v366 = vsel %vm362, 1, 0
    %v367 = vsel %vm363, 1, 0
    %v368 = vsel %vm364, 1, 0
    %v369 = vsel %vm365, 1, 0
    %v370 = vcvt.s32.f32 %v366
    %v371 = vcvt.s32.f32 %v367
    %v372 = vcvt.s32.f32 %v368
    %v373 = vcvt.s32.f32 %v369
    %v374 = vpack.c.bf16 %v371, %v370
    %v375 = vpack.c.bf16 %v373, %v372
    %vm376 = vcmp.ge.f32.partialorder %v162, 15.0
    %vm377 = vcmp.ge.f32.partialorder %v163, 15.0
    %vm378 = vcmp.ge.f32.partialorder %v164, 15.0
    %vm379 = vcmp.ge.f32.partialorder %v165, 15.0
    %v380 = vsel %vm376, 1, 0
    %v381 = vsel %vm377, 1, 0
    %v382 = vsel %vm378, 1, 0
    %v383 = vsel %vm379, 1, 0
    %v384 = vcvt.s32.f32 %v380
    %v385 = vcvt.s32.f32 %v381
    %v386 = vcvt.s32.f32 %v382
    %v387 = vcvt.s32.f32 %v383
    %v388 = vpack.c.bf16 %v385, %v384
    %v389 = vpack.c.bf16 %v387, %v386
    %vm390 = vcmp.ge.f32.partialorder %v162, 16.0
    %vm391 = vcmp.ge.f32.partialorder %v163, 16.0
    %vm392 = vcmp.ge.f32.partialorder %v164, 16.0
    %vm393 = vcmp.ge.f32.partialorder %v165, 16.0
    %v394 = vsel %vm390, 1, 0
    %v395 = vsel %vm391, 1, 0
    %v396 = vsel %vm392, 1, 0
    %v397 = vsel %vm393, 1, 0
    %v398 = vcvt.s32.f32 %v394
    %v399 = vcvt.s32.f32 %v395
    %v400 = vcvt.s32.f32 %v396
    %v401 = vcvt.s32.f32 %v397
    %v402 = vpack.c.bf16 %v399, %v398
    %v403 = vpack.c.bf16 %v401, %v400
    %vm404 = vcmp.ge.f32.partialorder %v162, 17.0
    %vm405 = vcmp.ge.f32.partialorder %v163, 17.0
    %vm406 = vcmp.ge.f32.partialorder %v164, 17.0
    %vm407 = vcmp.ge.f32.partialorder %v165, 17.0
    %v408 = vsel %vm404, 1, 0
    %v409 = vsel %vm405, 1, 0
    %v410 = vsel %vm406, 1, 0
    %v411 = vsel %vm407, 1, 0
    %v412 = vcvt.s32.f32 %v408
    %v413 = vcvt.s32.f32 %v409
    %v414 = vcvt.s32.f32 %v410
    %v415 = vcvt.s32.f32 %v411
    %v416 = vpack.c.bf16 %v413, %v412
    %v417 = vpack.c.bf16 %v415, %v414
    %vm418 = vcmp.ge.f32.partialorder %v162, 18.0
    %vm419 = vcmp.ge.f32.partialorder %v163, 18.0
    %vm420 = vcmp.ge.f32.partialorder %v164, 18.0
    %vm421 = vcmp.ge.f32.partialorder %v165, 18.0
    %v422 = vsel %vm418, 1, 0
    %v423 = vsel %vm419, 1, 0
    %v424 = vsel %vm420, 1, 0
    %v425 = vsel %vm421, 1, 0
    %v426 = vcvt.s32.f32 %v422
    %v427 = vcvt.s32.f32 %v423
    %v428 = vcvt.s32.f32 %v424
    %v429 = vcvt.s32.f32 %v425
    %v430 = vpack.c.bf16 %v427, %v426
    %v431 = vpack.c.bf16 %v429, %v428
    %vm432 = vcmp.ge.f32.partialorder %v162, 19.0
    %vm433 = vcmp.ge.f32.partialorder %v163, 19.0
    %vm434 = vcmp.ge.f32.partialorder %v164, 19.0
    %vm435 = vcmp.ge.f32.partialorder %v165, 19.0
    %v436 = vsel %vm432, 1, 0
    %v437 = vsel %vm433, 1, 0
    %v438 = vsel %vm434, 1, 0
    %v439 = vsel %vm435, 1, 0
    %v440 = vcvt.s32.f32 %v436
    %v441 = vcvt.s32.f32 %v437
    %v442 = vcvt.s32.f32 %v438
    %v443 = vcvt.s32.f32 %v439
    %v444 = vpack.c.bf16 %v441, %v440
    %v445 = vpack.c.bf16 %v443, %v442
    %vm446 = vcmp.ge.f32.partialorder %v162, 20.0
    %vm447 = vcmp.ge.f32.partialorder %v163, 20.0
    %vm448 = vcmp.ge.f32.partialorder %v164, 20.0
    %vm449 = vcmp.ge.f32.partialorder %v165, 20.0
    %v450 = vsel %vm446, 1, 0
    %v451 = vsel %vm447, 1, 0
    %v452 = vsel %vm448, 1, 0
    %v453 = vsel %vm449, 1, 0
    %v454 = vcvt.s32.f32 %v450
    %v455 = vcvt.s32.f32 %v451
    %v456 = vcvt.s32.f32 %v452
    %v457 = vcvt.s32.f32 %v453
    %v458 = vpack.c.bf16 %v455, %v454
    %v459 = vpack.c.bf16 %v457, %v456
    %vm460 = vcmp.ge.f32.partialorder %v162, 21.0
    %vm461 = vcmp.ge.f32.partialorder %v163, 21.0
    %vm462 = vcmp.ge.f32.partialorder %v164, 21.0
    %vm463 = vcmp.ge.f32.partialorder %v165, 21.0
    %v464 = vsel %vm460, 1, 0
    %v465 = vsel %vm461, 1, 0
    %v466 = vsel %vm462, 1, 0
    %v467 = vsel %vm463, 1, 0
    %v468 = vcvt.s32.f32 %v464
    %v469 = vcvt.s32.f32 %v465
    %v470 = vcvt.s32.f32 %v466
    %v471 = vcvt.s32.f32 %v467
    %v472 = vpack.c.bf16 %v469, %v468
    %v473 = vpack.c.bf16 %v471, %v470
    %vm474 = vcmp.ge.f32.partialorder %v162, 22.0
    %vm475 = vcmp.ge.f32.partialorder %v163, 22.0
    %vm476 = vcmp.ge.f32.partialorder %v164, 22.0
    %vm477 = vcmp.ge.f32.partialorder %v165, 22.0
    %v478 = vsel %vm474, 1, 0
    %v479 = vsel %vm475, 1, 0
    %v480 = vsel %vm476, 1, 0
    %v481 = vsel %vm477, 1, 0
    %v482 = vcvt.s32.f32 %v478
    %v483 = vcvt.s32.f32 %v479
    %v484 = vcvt.s32.f32 %v480
    %v485 = vcvt.s32.f32 %v481
    %v486 = vpack.c.bf16 %v483, %v482
    %v487 = vpack.c.bf16 %v485, %v484
    %vm488 = vcmp.ge.f32.partialorder %v162, 23.0
    %vm489 = vcmp.ge.f32.partialorder %v163, 23.0
    %vm490 = vcmp.ge.f32.partialorder %v164, 23.0
    %vm491 = vcmp.ge.f32.partialorder %v165, 23.0
    %v492 = vsel %vm488, 1, 0
    %v493 = vsel %vm489, 1, 0
    %v494 = vsel %vm490, 1, 0
    %v495 = vsel %vm491, 1, 0
    %v496 = vcvt.s32.f32 %v492
    %v497 = vcvt.s32.f32 %v493
    %v498 = vcvt.s32.f32 %v494
    %v499 = vcvt.s32.f32 %v495
    %v500 = vpack.c.bf16 %v497, %v496
    %v501 = vpack.c.bf16 %v499, %v498
    %vm502 = vcmp.ge.f32.partialorder %v162, 24.0
    %vm503 = vcmp.ge.f32.partialorder %v163, 24.0
    %vm504 = vcmp.ge.f32.partialorder %v164, 24.0
    %vm505 = vcmp.ge.f32.partialorder %v165, 24.0
    %v506 = vsel %vm502, 1, 0
    %v507 = vsel %vm503, 1, 0
    %v508 = vsel %vm504, 1, 0
    %v509 = vsel %vm505, 1, 0
    %v510 = vcvt.s32.f32 %v506
    %v511 = vcvt.s32.f32 %v507
    %v512 = vcvt.s32.f32 %v508
    %v513 = vcvt.s32.f32 %v509
    %v514 = vpack.c.bf16 %v511, %v510
    %v515 = vpack.c.bf16 %v513, %v512
    %vm516 = vcmp.ge.f32.partialorder %v162, 25.0
    %vm517 = vcmp.ge.f32.partialorder %v163, 25.0
    %vm518 = vcmp.ge.f32.partialorder %v164, 25.0
    %vm519 = vcmp.ge.f32.partialorder %v165, 25.0
    %v520 = vsel %vm516, 1, 0
    %v521 = vsel %vm517, 1, 0
    %v522 = vsel %vm518, 1, 0
    %v523 = vsel %vm519, 1, 0
    %v524 = vcvt.s32.f32 %v520
    %v525 = vcvt.s32.f32 %v521
    %v526 = vcvt.s32.f32 %v522
    %v527 = vcvt.s32.f32 %v523
    %v528 = vpack.c.bf16 %v525, %v524
    %v529 = vpack.c.bf16 %v527, %v526
    %vm530 = vcmp.ge.f32.partialorder %v162, 26.0
    %vm531 = vcmp.ge.f32.partialorder %v163, 26.0
    %vm532 = vcmp.ge.f32.partialorder %v164, 26.0
    %vm533 = vcmp.ge.f32.partialorder %v165, 26.0
    %v534 = vsel %vm530, 1, 0
    %v535 = vsel %vm531, 1, 0
    %v536 = vsel %vm532, 1, 0
    %v537 = vsel %vm533, 1, 0
    %v538 = vcvt.s32.f32 %v534
    %v539 = vcvt.s32.f32 %v535
    %v540 = vcvt.s32.f32 %v536
    %v541 = vcvt.s32.f32 %v537
    %v542 = vpack.c.bf16 %v539, %v538
    %v543 = vpack.c.bf16 %v541, %v540
    %vm544 = vcmp.ge.f32.partialorder %v162, 27.0
    %vm545 = vcmp.ge.f32.partialorder %v163, 27.0
    %vm546 = vcmp.ge.f32.partialorder %v164, 27.0
    %vm547 = vcmp.ge.f32.partialorder %v165, 27.0
    %v548 = vsel %vm544, 1, 0
    %v549 = vsel %vm545, 1, 0
    %v550 = vsel %vm546, 1, 0
    %v551 = vsel %vm547, 1, 0
    %v552 = vcvt.s32.f32 %v548
    %v553 = vcvt.s32.f32 %v549
    %v554 = vcvt.s32.f32 %v550
    %v555 = vcvt.s32.f32 %v551
    %v556 = vpack.c.bf16 %v553, %v552
    %v557 = vpack.c.bf16 %v555, %v554
    %vm558 = vcmp.ge.f32.partialorder %v162, 28.0
    %vm559 = vcmp.ge.f32.partialorder %v163, 28.0
    %vm560 = vcmp.ge.f32.partialorder %v164, 28.0
    %vm561 = vcmp.ge.f32.partialorder %v165, 28.0
    %v562 = vsel %vm558, 1, 0
    %v563 = vsel %vm559, 1, 0
    %v564 = vsel %vm560, 1, 0
    %v565 = vsel %vm561, 1, 0
    %v566 = vcvt.s32.f32 %v562
    %v567 = vcvt.s32.f32 %v563
    %v568 = vcvt.s32.f32 %v564
    %v569 = vcvt.s32.f32 %v565
    %v570 = vpack.c.bf16 %v567, %v566
    %v571 = vpack.c.bf16 %v569, %v568
    %vm572 = vcmp.ge.f32.partialorder %v162, 29.0
    %vm573 = vcmp.ge.f32.partialorder %v163, 29.0
    %vm574 = vcmp.ge.f32.partialorder %v164, 29.0
    %vm575 = vcmp.ge.f32.partialorder %v165, 29.0
    %v576 = vsel %vm572, 1, 0
    %v577 = vsel %vm573, 1, 0
    %v578 = vsel %vm574, 1, 0
    %v579 = vsel %vm575, 1, 0
    %v580 = vcvt.s32.f32 %v576
    %v581 = vcvt.s32.f32 %v577
    %v582 = vcvt.s32.f32 %v578
    %v583 = vcvt.s32.f32 %v579
    %v584 = vpack.c.bf16 %v581, %v580
    %v585 = vpack.c.bf16 %v583, %v582
    %vm586 = vcmp.ge.f32.partialorder %v162, 30.0
    %vm587 = vcmp.ge.f32.partialorder %v163, 30.0
    %vm588 = vcmp.ge.f32.partialorder %v164, 30.0
    %vm589 = vcmp.ge.f32.partialorder %v165, 30.0
    %v590 = vsel %vm586, 1, 0
    %v591 = vsel %vm587, 1, 0
    %v592 = vsel %vm588, 1, 0
    %v593 = vsel %vm589, 1, 0
    %v594 = vcvt.s32.f32 %v590
    %v595 = vcvt.s32.f32 %v591
    %v596 = vcvt.s32.f32 %v592
    %v597 = vcvt.s32.f32 %v593
    %v598 = vpack.c.bf16 %v595, %v594
    %v599 = vpack.c.bf16 %v597, %v596
    %vm600 = vcmp.ge.f32.partialorder %v162, 31.0
    %vm601 = vcmp.ge.f32.partialorder %v163, 31.0
    %vm602 = vcmp.ge.f32.partialorder %v164, 31.0
    %vm603 = vcmp.ge.f32.partialorder %v165, 31.0
    %v604 = vsel %vm600, 1, 0
    %v605 = vsel %vm601, 1, 0
    %v606 = vsel %vm602, 1, 0
    %v607 = vsel %vm603, 1, 0
    %v608 = vcvt.s32.f32 %v604
    %v609 = vcvt.s32.f32 %v605
    %v610 = vcvt.s32.f32 %v606
    %v611 = vcvt.s32.f32 %v607
    %v612 = vpack.c.bf16 %v609, %v608
    %v613 = vpack.c.bf16 %v611, %v610
    %v616 = vunpack.c.l.b16 %v178
    %v617 = vunpack.c.h.b16 %v178
    %v618 = vunpack.c.l.b16 %v179
    %v619 = vunpack.c.h.b16 %v179
    %v620 = vpack.c.b16 %v618, %v616
    %v621 = vpack.c.b16 %v619, %v617
    %v626 = vunpack.c.l.b16 %v192
    %v627 = vunpack.c.h.b16 %v192
    %v628 = vunpack.c.l.b16 %v193
    %v629 = vunpack.c.h.b16 %v193
    %v630 = vpack.c.b16 %v628, %v626
    %v631 = vpack.c.b16 %v629, %v627
    %v636 = vunpack.c.l.b16 %v206
    %v637 = vunpack.c.h.b16 %v206
    %v638 = vunpack.c.l.b16 %v207
    %v639 = vunpack.c.h.b16 %v207
    %v640 = vpack.c.b16 %v638, %v636
    %v641 = vpack.c.b16 %v639, %v637
    %v646 = vunpack.c.l.b16 %v220
    %v647 = vunpack.c.h.b16 %v220
    %v648 = vunpack.c.l.b16 %v221
    %v649 = vunpack.c.h.b16 %v221
    %v650 = vpack.c.b16 %v648, %v646
    %v651 = vpack.c.b16 %v649, %v647
    %v656 = vunpack.c.l.b16 %v234
    %v657 = vunpack.c.h.b16 %v234
    %v658 = vunpack.c.l.b16 %v235
    %v659 = vunpack.c.h.b16 %v235
    %v660 = vpack.c.b16 %v658, %v656
    %v661 = vpack.c.b16 %v659, %v657
    %v666 = vunpack.c.l.b16 %v248
    %v667 = vunpack.c.h.b16 %v248
    %v668 = vunpack.c.l.b16 %v249
    %v669 = vunpack.c.h.b16 %v249
    %v670 = vpack.c.b16 %v668, %v666
    %v671 = vpack.c.b16 %v669, %v667
    %v676 = vunpack.c.l.b16 %v262
    %v677 = vunpack.c.h.b16 %v262
    %v678 = vunpack.c.l.b16 %v263
    %v679 = vunpack.c.h.b16 %v263
    %v680 = vpack.c.b16 %v678, %v676
    %v681 = vpack.c.b16 %v679, %v677
    %v686 = vunpack.c.l.b16 %v276
    %v687 = vunpack.c.h.b16 %v276
    %v688 = vunpack.c.l.b16 %v277
    %v689 = vunpack.c.h.b16 %v277
    %v690 = vpack.c.b16 %v688, %v686
    %v691 = vpack.c.b16 %v689, %v687
    %v696 = vunpack.c.l.b16 %v290
    %v697 = vunpack.c.h.b16 %v290
    %v698 = vunpack.c.l.b16 %v291
    %v699 = vunpack.c.h.b16 %v291
    %v700 = vpack.c.b16 %v698, %v696
    %v701 = vpack.c.b16 %v699, %v697
    %v706 = vunpack.c.l.b16 %v304
    %v707 = vunpack.c.h.b16 %v304
    %v708 = vunpack.c.l.b16 %v305
    %v709 = vunpack.c.h.b16 %v305
    %v710 = vpack.c.b16 %v708, %v706
    %v711 = vpack.c.b16 %v709, %v707
    %v716 = vunpack.c.l.b16 %v318
    %v717 = vunpack.c.h.b16 %v318
    %v718 = vunpack.c.l.b16 %v319
    %v719 = vunpack.c.h.b16 %v319
    %v720 = vpack.c.b16 %v718, %v716
    %v721 = vpack.c.b16 %v719, %v717
    %v726 = vunpack.c.l.b16 %v332
    %v727 = vunpack.c.h.b16 %v332
    %v728 = vunpack.c.l.b16 %v333
    %v729 = vunpack.c.h.b16 %v333
    %v730 = vpack.c.b16 %v728, %v726
    %v731 = vpack.c.b16 %v729, %v727
    %v736 = vunpack.c.l.b16 %v346
    %v737 = vunpack.c.h.b16 %v346
    %v738 = vunpack.c.l.b16 %v347
    %v739 = vunpack.c.h.b16 %v347
    %v740 = vpack.c.b16 %v738, %v736
    %v741 = vpack.c.b16 %v739, %v737
    %v746 = vunpack.c.l.b16 %v360
    %v747 = vunpack.c.h.b16 %v360
    %v748 = vunpack.c.l.b16 %v361
    %v749 = vunpack.c.h.b16 %v361
    %v750 = vpack.c.b16 %v748, %v746
    %v751 = vpack.c.b16 %v749, %v747
    %v756 = vunpack.c.l.b16 %v374
    %v757 = vunpack.c.h.b16 %v374
    %v758 = vunpack.c.l.b16 %v375
    %v759 = vunpack.c.h.b16 %v375
    %v760 = vpack.c.b16 %v758, %v756
    %v761 = vpack.c.b16 %v759, %v757
    %v766 = vunpack.c.l.b16 %v388
    %v767 = vunpack.c.h.b16 %v388
    %v768 = vunpack.c.l.b16 %v389
    %v769 = vunpack.c.h.b16 %v389
    %v770 = vpack.c.b16 %v768, %v766
    %v771 = vpack.c.b16 %v769, %v767
    %v776 = vunpack.c.l.b16 %v402
    %v777 = vunpack.c.h.b16 %v402
    %v778 = vunpack.c.l.b16 %v403
    %v779 = vunpack.c.h.b16 %v403
    %v780 = vpack.c.b16 %v778, %v776
    %v781 = vpack.c.b16 %v779, %v777
    %v786 = vunpack.c.l.b16 %v416
    %v787 = vunpack.c.h.b16 %v416
    %v788 = vunpack.c.l.b16 %v417
    %v789 = vunpack.c.h.b16 %v417
    %v790 = vpack.c.b16 %v788, %v786
    %v791 = vpack.c.b16 %v789, %v787
    %v796 = vunpack.c.l.b16 %v430
    %v797 = vunpack.c.h.b16 %v430
    %v798 = vunpack.c.l.b16 %v431
    %v799 = vunpack.c.h.b16 %v431
    %v800 = vpack.c.b16 %v798, %v796
    %v801 = vpack.c.b16 %v799, %v797
    %v806 = vunpack.c.l.b16 %v444
    %v807 = vunpack.c.h.b16 %v444
    %v808 = vunpack.c.l.b16 %v445
    %v809 = vunpack.c.h.b16 %v445
    %v810 = vpack.c.b16 %v808, %v806
    %v811 = vpack.c.b16 %v809, %v807
    %v816 = vunpack.c.l.b16 %v458
    %v817 = vunpack.c.h.b16 %v458
    %v818 = vunpack.c.l.b16 %v459
    %v819 = vunpack.c.h.b16 %v459
    %v820 = vpack.c.b16 %v818, %v816
    %v821 = vpack.c.b16 %v819, %v817
    %v826 = vunpack.c.l.b16 %v472
    %v827 = vunpack.c.h.b16 %v472
    %v828 = vunpack.c.l.b16 %v473
    %v829 = vunpack.c.h.b16 %v473
    %v830 = vpack.c.b16 %v828, %v826
    %v831 = vpack.c.b16 %v829, %v827
    %v836 = vunpack.c.l.b16 %v486
    %v837 = vunpack.c.h.b16 %v486
    %v838 = vunpack.c.l.b16 %v487
    %v839 = vunpack.c.h.b16 %v487
    %v840 = vpack.c.b16 %v838, %v836
    %v841 = vpack.c.b16 %v839, %v837
    %v846 = vunpack.c.l.b16 %v500
    %v847 = vunpack.c.h.b16 %v500
    %v848 = vunpack.c.l.b16 %v501
    %v849 = vunpack.c.h.b16 %v501
    %v850 = vpack.c.b16 %v848, %v846
    %v851 = vpack.c.b16 %v849, %v847
    %v856 = vunpack.c.l.b16 %v514
    %v857 = vunpack.c.h.b16 %v514
    %v858 = vunpack.c.l.b16 %v515
    %v859 = vunpack.c.h.b16 %v515
    %v860 = vpack.c.b16 %v858, %v856
    %v861 = vpack.c.b16 %v859, %v857
    %v866 = vunpack.c.l.b16 %v528
    %v867 = vunpack.c.h.b16 %v528
    %v868 = vunpack.c.l.b16 %v529
    %v869 = vunpack.c.h.b16 %v529
    %v870 = vpack.c.b16 %v868, %v866
    %v871 = vpack.c.b16 %v869, %v867
    %v876 = vunpack.c.l.b16 %v542
    %v877 = vunpack.c.h.b16 %v542
    %v878 = vunpack.c.l.b16 %v543
    %v879 = vunpack.c.h.b16 %v543
    %v880 = vpack.c.b16 %v878, %v876
    %v881 = vpack.c.b16 %v879, %v877
    %v886 = vunpack.c.l.b16 %v556
    %v887 = vunpack.c.h.b16 %v556
    %v888 = vunpack.c.l.b16 %v557
    %v889 = vunpack.c.h.b16 %v557
    %v890 = vpack.c.b16 %v888, %v886
    %v891 = vpack.c.b16 %v889, %v887
    %v896 = vunpack.c.l.b16 %v570
    %v897 = vunpack.c.h.b16 %v570
    %v898 = vunpack.c.l.b16 %v571
    %v899 = vunpack.c.h.b16 %v571
    %v900 = vpack.c.b16 %v898, %v896
    %v901 = vpack.c.b16 %v899, %v897
    %v906 = vunpack.c.l.b16 %v584
    %v907 = vunpack.c.h.b16 %v584
    %v908 = vunpack.c.l.b16 %v585
    %v909 = vunpack.c.h.b16 %v585
    %v910 = vpack.c.b16 %v908, %v906
    %v911 = vpack.c.b16 %v909, %v907
    %v916 = vunpack.c.l.b16 %v598
    %v917 = vunpack.c.h.b16 %v598
    %v918 = vunpack.c.l.b16 %v599
    %v919 = vunpack.c.h.b16 %v599
    %v920 = vpack.c.b16 %v918, %v916
    %v921 = vpack.c.b16 %v919, %v917
    %v926 = vunpack.c.l.b16 %v612
    %v927 = vunpack.c.h.b16 %v612
    %v928 = vunpack.c.l.b16 %v613
    %v929 = vunpack.c.h.b16 %v613
    %v930 = vpack.c.b16 %v928, %v926
    %v931 = vpack.c.b16 %v929, %v927
    %v934 = vld [vmem:[%s4] sm:$0xff]
    %v935 = vld [vmem:[%s4 + $0x8] sm:$0xff]
    %v936 = vld [vmem:[%s4 + $0x10] sm:$0xff]
    %v937 = vld [vmem:[%s4 + $0x18] sm:$0xff]
    %v938 = vld [vmem:[%s4 + $0x20] sm:$0xff]
    %v939 = vld [vmem:[%s4 + $0x28] sm:$0xff]
    %v940 = vld [vmem:[%s4 + $0x30] sm:$0xff]
    %v941 = vld [vmem:[%s4 + $0x38] sm:$0xff]
    %v942 = vld [vmem:[%s4 + $0x40] sm:$0xff]
    %v943 = vld [vmem:[%s4 + $0x48] sm:$0xff]
    %v944 = vld [vmem:[%s4 + $0x50] sm:$0xff]
    %v945 = vld [vmem:[%s4 + $0x58] sm:$0xff]
    %v946 = vld [vmem:[%s4 + $0x60] sm:$0xff]
    %v947 = vld [vmem:[%s4 + $0x68] sm:$0xff]
    %v948 = vld [vmem:[%s4 + $0x70] sm:$0xff]
    %v949 = vld [vmem:[%s4 + $0x78] sm:$0xff]
    %v950 = vld [vmem:[%s4 + $0x80] sm:$0xff]
    %v951 = vld [vmem:[%s4 + $0x88] sm:$0xff]
    %v952 = vld [vmem:[%s4 + $0x90] sm:$0xff]
    %v953 = vld [vmem:[%s4 + $0x98] sm:$0xff]
    %v954 = vld [vmem:[%s4 + $0xa0] sm:$0xff]
    %v955 = vld [vmem:[%s4 + $0xa8] sm:$0xff]
    %v956 = vld [vmem:[%s4 + $0xb0] sm:$0xff]
    %v957 = vld [vmem:[%s4 + $0xb8] sm:$0xff]
    %v958 = vld [vmem:[%s4 + $0xc0] sm:$0xff]
    %v959 = vld [vmem:[%s4 + $0xc8] sm:$0xff]
    %v960 = vld [vmem:[%s4 + $0xd0] sm:$0xff]
    %v961 = vld [vmem:[%s4 + $0xd8] sm:$0xff]
    %v962 = vld [vmem:[%s4 + $0xe0] sm:$0xff]
    %v963 = vld [vmem:[%s4 + $0xe8] sm:$0xff]
    %v964 = vld [vmem:[%s4 + $0xf0] sm:$0xff]
    %v965 = vld [vmem:[%s4 + $0xf8] sm:$0xff]
    %v966 = vld [vmem:[%s4 + $0x100] sm:$0xff]
    %v967 = vld [vmem:[%s4 + $0x108] sm:$0xff]
    %v968 = vld [vmem:[%s4 + $0x110] sm:$0xff]
    %v969 = vld [vmem:[%s4 + $0x118] sm:$0xff]
    %v970 = vld [vmem:[%s4 + $0x120] sm:$0xff]
    %v971 = vld [vmem:[%s4 + $0x128] sm:$0xff]
    %v972 = vld [vmem:[%s4 + $0x130] sm:$0xff]
    %v973 = vld [vmem:[%s4 + $0x138] sm:$0xff]
    %v974 = vld [vmem:[%s4 + $0x140] sm:$0xff]
    %v975 = vld [vmem:[%s4 + $0x148] sm:$0xff]
    %v976 = vld [vmem:[%s4 + $0x150] sm:$0xff]
    %v977 = vld [vmem:[%s4 + $0x158] sm:$0xff]
    %v978 = vld [vmem:[%s4 + $0x160] sm:$0xff]
    %v979 = vld [vmem:[%s4 + $0x168] sm:$0xff]
    %v980 = vld [vmem:[%s4 + $0x170] sm:$0xff]
    %v981 = vld [vmem:[%s4 + $0x178] sm:$0xff]
    %v982 = vld [vmem:[%s4 + $0x180] sm:$0xff]
    %v983 = vld [vmem:[%s4 + $0x188] sm:$0xff]
    %v984 = vld [vmem:[%s4 + $0x190] sm:$0xff]
    %v985 = vld [vmem:[%s4 + $0x198] sm:$0xff]
    %v986 = vld [vmem:[%s4 + $0x1a0] sm:$0xff]
    %v987 = vld [vmem:[%s4 + $0x1a8] sm:$0xff]
    %v988 = vld [vmem:[%s4 + $0x1b0] sm:$0xff]
    %v989 = vld [vmem:[%s4 + $0x1b8] sm:$0xff]
    %v990 = vld [vmem:[%s4 + $0x1c0] sm:$0xff]
    %v991 = vld [vmem:[%s4 + $0x1c8] sm:$0xff]
    %v992 = vld [vmem:[%s4 + $0x1d0] sm:$0xff]
    %v993 = vld [vmem:[%s4 + $0x1d8] sm:$0xff]
    %v994 = vld [vmem:[%s4 + $0x1e0] sm:$0xff]
    %v995 = vld [vmem:[%s4 + $0x1e8] sm:$0xff]
    %v996 = vld [vmem:[%s4 + $0x1f0] sm:$0xff]
    %v997 = vld [vmem:[%s4 + $0x1f8] sm:$0xff]
    %998 = vmatpush.bf16.msra.mxu0 1065369472
    %999 = vmatpush.bf16.msra.mxu0 1065369472
    %1000 = vmatpush.bf16.msra.mxu0 1065369472
    %1001 = vmatpush.bf16.msra.mxu0 1065369472
    %1002 = vmatpush.bf16.msra.mxu0 1065369472
    %1003 = vmatpush.bf16.msra.mxu0 1065369472
    %1004 = vmatpush.bf16.msra.mxu0 1065369472
    %1005 = vmatpush.bf16.msra.mxu0 1065369472
    %1006 = vmatmul.bf16.gmra.mxu0 %v620
    %v1007 = vpop.f32.mrf.mxu0
    %v1008 = vadd.f32 0.0, %v1007
    %v1009 = vpop.f32.mrf.mxu0
    %v1010 = vadd.f32 0.0, %v1009
    %1011 = vmatmul.bf16.gmra.mxu0 %v630
    %v1012 = vpop.f32.mrf.mxu0
    %v1013 = vadd.f32 0.0, %v1012
    %v1014 = vpop.f32.mrf.mxu0
    %v1015 = vadd.f32 0.0, %v1014
    %1016 = vmatmul.bf16.gmra.mxu0 %v640
    %v1017 = vpop.f32.mrf.mxu0
    %v1018 = vadd.f32 0.0, %v1017
    %v1019 = vpop.f32.mrf.mxu0
    %v1020 = vadd.f32 0.0, %v1019
    %1021 = vmatmul.bf16.gmra.mxu0 %v650
    %v1022 = vpop.f32.mrf.mxu0
    %v1023 = vadd.f32 0.0, %v1022
    %v1024 = vpop.f32.mrf.mxu0
    %v1025 = vadd.f32 0.0, %v1024
    %1026 = vmatmul.bf16.gmra.mxu0 %v660
    %v1027 = vpop.f32.mrf.mxu0
    %v1028 = vadd.f32 0.0, %v1027
    %v1029 = vpop.f32.mrf.mxu0
    %v1030 = vadd.f32 0.0, %v1029
    %1031 = vmatmul.bf16.gmra.mxu0 %v670
    %v1032 = vpop.f32.mrf.mxu0
    %v1033 = vadd.f32 0.0, %v1032
    %v1034 = vpop.f32.mrf.mxu0
    %v1035 = vadd.f32 0.0, %v1034
    %1036 = vmatmul.bf16.gmra.mxu0 %v680
    %v1037 = vpop.f32.mrf.mxu0
    %v1038 = vadd.f32 0.0, %v1037
    %v1039 = vpop.f32.mrf.mxu0
    %v1040 = vadd.f32 0.0, %v1039
    %1041 = vmatmul.bf16.gmra.mxu0 %v690
    %v1042 = vpop.f32.mrf.mxu0
    %v1043 = vadd.f32 0.0, %v1042
    %v1044 = vpop.f32.mrf.mxu0
    %v1045 = vadd.f32 0.0, %v1044
    %1046 = vmatmul.bf16.gmra.mxu0 %v700
    %v1047 = vpop.f32.mrf.mxu0
    %v1048 = vadd.f32 0.0, %v1047
    %v1049 = vpop.f32.mrf.mxu0
    %v1050 = vadd.f32 0.0, %v1049
    %1051 = vmatmul.bf16.gmra.mxu0 %v710
    %v1052 = vpop.f32.mrf.mxu0
    %v1053 = vadd.f32 0.0, %v1052
    %v1054 = vpop.f32.mrf.mxu0
    %v1055 = vadd.f32 0.0, %v1054
    %1056 = vmatmul.bf16.gmra.mxu0 %v720
    %v1057 = vpop.f32.mrf.mxu0
    %v1058 = vadd.f32 0.0, %v1057
    %v1059 = vpop.f32.mrf.mxu0
    %v1060 = vadd.f32 0.0, %v1059
    %1061 = vmatmul.bf16.gmra.mxu0 %v730
    %v1062 = vpop.f32.mrf.mxu0
    %v1063 = vadd.f32 0.0, %v1062
    %v1064 = vpop.f32.mrf.mxu0
    %v1065 = vadd.f32 0.0, %v1064
    %1066 = vmatmul.bf16.gmra.mxu0 %v740
    %v1067 = vpop.f32.mrf.mxu0
    %v1068 = vadd.f32 0.0, %v1067
    %v1069 = vpop.f32.mrf.mxu0
    %v1070 = vadd.f32 0.0, %v1069
    %1071 = vmatmul.bf16.gmra.mxu0 %v750
    %v1072 = vpop.f32.mrf.mxu0
    %v1073 = vadd.f32 0.0, %v1072
    %v1074 = vpop.f32.mrf.mxu0
    %v1075 = vadd.f32 0.0, %v1074
    %1076 = vmatmul.bf16.gmra.mxu0 %v760
    %v1077 = vpop.f32.mrf.mxu0
    %v1078 = vadd.f32 0.0, %v1077
    %v1079 = vpop.f32.mrf.mxu0
    %v1080 = vadd.f32 0.0, %v1079
    %1081 = vmatmul.bf16.gmra.mxu0 %v770
    %v1082 = vpop.f32.mrf.mxu0
    %v1083 = vadd.f32 0.0, %v1082
    %v1084 = vpop.f32.mrf.mxu0
    %v1085 = vadd.f32 0.0, %v1084
    %1086 = vmatmul.bf16.gmra.mxu0 %v780
    %v1087 = vpop.f32.mrf.mxu0
    %v1088 = vadd.f32 0.0, %v1087
    %v1089 = vpop.f32.mrf.mxu0
    %v1090 = vadd.f32 0.0, %v1089
    %1091 = vmatmul.bf16.gmra.mxu0 %v790
    %v1092 = vpop.f32.mrf.mxu0
    %v1093 = vadd.f32 0.0, %v1092
    %v1094 = vpop.f32.mrf.mxu0
    %v1095 = vadd.f32 0.0, %v1094
    %1096 = vmatmul.bf16.gmra.mxu0 %v800
    %v1097 = vpop.f32.mrf.mxu0
    %v1098 = vadd.f32 0.0, %v1097
    %v1099 = vpop.f32.mrf.mxu0
    %v1100 = vadd.f32 0.0, %v1099
    %1101 = vmatmul.bf16.gmra.mxu0 %v810
    %v1102 = vpop.f32.mrf.mxu0
    %v1103 = vadd.f32 0.0, %v1102
    %v1104 = vpop.f32.mrf.mxu0
    %v1105 = vadd.f32 0.0, %v1104
    %1106 = vmatmul.bf16.gmra.mxu0 %v820
    %v1107 = vpop.f32.mrf.mxu0
    %v1108 = vadd.f32 0.0, %v1107
    %v1109 = vpop.f32.mrf.mxu0
    %v1110 = vadd.f32 0.0, %v1109
    %1111 = vmatmul.bf16.gmra.mxu0 %v830
    %v1112 = vpop.f32.mrf.mxu0
    %v1113 = vadd.f32 0.0, %v1112
    %v1114 = vpop.f32.mrf.mxu0
    %v1115 = vadd.f32 0.0, %v1114
    %1116 = vmatmul.bf16.gmra.mxu0 %v840
    %v1117 = vpop.f32.mrf.mxu0
    %v1118 = vadd.f32 0.0, %v1117
    %v1119 = vpop.f32.mrf.mxu0
    %v1120 = vadd.f32 0.0, %v1119
    %1121 = vmatmul.bf16.gmra.mxu0 %v850
    %v1122 = vpop.f32.mrf.mxu0
    %v1123 = vadd.f32 0.0, %v1122
    %v1124 = vpop.f32.mrf.mxu0
    %v1125 = vadd.f32 0.0, %v1124
    %1126 = vmatmul.bf16.gmra.mxu0 %v860
    %v1127 = vpop.f32.mrf.mxu0
    %v1128 = vadd.f32 0.0, %v1127
    %v1129 = vpop.f32.mrf.mxu0
    %v1130 = vadd.f32 0.0, %v1129
    %1131 = vmatmul.bf16.gmra.mxu0 %v870
    %v1132 = vpop.f32.mrf.mxu0
    %v1133 = vadd.f32 0.0, %v1132
    %v1134 = vpop.f32.mrf.mxu0
    %v1135 = vadd.f32 0.0, %v1134
    %1136 = vmatmul.bf16.gmra.mxu0 %v880
    %v1137 = vpop.f32.mrf.mxu0
    %v1138 = vadd.f32 0.0, %v1137
    %v1139 = vpop.f32.mrf.mxu0
    %v1140 = vadd.f32 0.0, %v1139
    %1141 = vmatmul.bf16.gmra.mxu0 %v890
    %v1142 = vpop.f32.mrf.mxu0
    %v1143 = vadd.f32 0.0, %v1142
    %v1144 = vpop.f32.mrf.mxu0
    %v1145 = vadd.f32 0.0, %v1144
    %1146 = vmatmul.bf16.gmra.mxu0 %v900
    %v1147 = vpop.f32.mrf.mxu0
    %v1148 = vadd.f32 0.0, %v1147
    %v1149 = vpop.f32.mrf.mxu0
    %v1150 = vadd.f32 0.0, %v1149
    %1151 = vmatmul.bf16.gmra.mxu0 %v910
    %v1152 = vpop.f32.mrf.mxu0
    %v1153 = vadd.f32 0.0, %v1152
    %v1154 = vpop.f32.mrf.mxu0
    %v1155 = vadd.f32 0.0, %v1154
    %1156 = vmatmul.bf16.gmra.mxu0 %v920
    %v1157 = vpop.f32.mrf.mxu0
    %v1158 = vadd.f32 0.0, %v1157
    %v1159 = vpop.f32.mrf.mxu0
    %v1160 = vadd.f32 0.0, %v1159
    %1161 = vmatmul.bf16.gmra.mxu0 %v930
    %v1162 = vpop.f32.mrf.mxu0
    %v1163 = vadd.f32 0.0, %v1162
    %v1164 = vpop.f32.mrf.mxu0
    %v1165 = vadd.f32 0.0, %v1164
    %1166 = vdwg.mxu0
    %1167 = vmatpush.bf16.msra.mxu0 1065369472
    %1168 = vmatpush.bf16.msra.mxu0 1065369472
    %1169 = vmatpush.bf16.msra.mxu0 1065369472
    %1170 = vmatpush.bf16.msra.mxu0 1065369472
    %1171 = vmatpush.bf16.msra.mxu0 1065369472
    %1172 = vmatpush.bf16.msra.mxu0 1065369472
    %1173 = vmatpush.bf16.msra.mxu0 1065369472
    %1174 = vmatpush.bf16.msra.mxu0 1065369472
    %1175 = vmatmul.bf16.gmra.mxu0 %v621
    %v1176 = vpop.f32.mrf.mxu0
    %v1177 = vadd.f32 %v1008, %v1176
    %v1178 = vpop.f32.mrf.mxu0
    %v1179 = vadd.f32 %v1010, %v1178
    %1180 = vmatmul.bf16.gmra.mxu0 %v631
    %v1181 = vpop.f32.mrf.mxu0
    %v1182 = vadd.f32 %v1013, %v1181
    %v1183 = vpop.f32.mrf.mxu0
    %v1184 = vadd.f32 %v1015, %v1183
    %1185 = vmatmul.bf16.gmra.mxu0 %v641
    %v1186 = vpop.f32.mrf.mxu0
    %v1187 = vadd.f32 %v1018, %v1186
    %v1188 = vpop.f32.mrf.mxu0
    %v1189 = vadd.f32 %v1020, %v1188
    %1190 = vmatmul.bf16.gmra.mxu0 %v651
    %v1191 = vpop.f32.mrf.mxu0
    %v1192 = vadd.f32 %v1023, %v1191
    %v1193 = vpop.f32.mrf.mxu0
    %v1194 = vadd.f32 %v1025, %v1193
    %1195 = vmatmul.bf16.gmra.mxu0 %v661
    %v1196 = vpop.f32.mrf.mxu0
    %v1197 = vadd.f32 %v1028, %v1196
    %v1198 = vpop.f32.mrf.mxu0
    %v1199 = vadd.f32 %v1030, %v1198
    %1200 = vmatmul.bf16.gmra.mxu0 %v671
    %v1201 = vpop.f32.mrf.mxu0
    %v1202 = vadd.f32 %v1033, %v1201
    %v1203 = vpop.f32.mrf.mxu0
    %v1204 = vadd.f32 %v1035, %v1203
    %1205 = vmatmul.bf16.gmra.mxu0 %v681
    %v1206 = vpop.f32.mrf.mxu0
    %v1207 = vadd.f32 %v1038, %v1206
    %v1208 = vpop.f32.mrf.mxu0
    %v1209 = vadd.f32 %v1040, %v1208
    %1210 = vmatmul.bf16.gmra.mxu0 %v691
    %v1211 = vpop.f32.mrf.mxu0
    %v1212 = vadd.f32 %v1043, %v1211
    %v1213 = vpop.f32.mrf.mxu0
    %v1214 = vadd.f32 %v1045, %v1213
    %1215 = vmatmul.bf16.gmra.mxu0 %v701
    %v1216 = vpop.f32.mrf.mxu0
    %v1217 = vadd.f32 %v1048, %v1216
    %v1218 = vpop.f32.mrf.mxu0
    %v1219 = vadd.f32 %v1050, %v1218
    %1220 = vmatmul.bf16.gmra.mxu0 %v711
    %v1221 = vpop.f32.mrf.mxu0
    %v1222 = vadd.f32 %v1053, %v1221
    %v1223 = vpop.f32.mrf.mxu0
    %v1224 = vadd.f32 %v1055, %v1223
    %1225 = vmatmul.bf16.gmra.mxu0 %v721
    %v1226 = vpop.f32.mrf.mxu0
    %v1227 = vadd.f32 %v1058, %v1226
    %v1228 = vpop.f32.mrf.mxu0
    %v1229 = vadd.f32 %v1060, %v1228
    %1230 = vmatmul.bf16.gmra.mxu0 %v731
    %v1231 = vpop.f32.mrf.mxu0
    %v1232 = vadd.f32 %v1063, %v1231
    %v1233 = vpop.f32.mrf.mxu0
    %v1234 = vadd.f32 %v1065, %v1233
    %1235 = vmatmul.bf16.gmra.mxu0 %v741
    %v1236 = vpop.f32.mrf.mxu0
    %v1237 = vadd.f32 %v1068, %v1236
    %v1238 = vpop.f32.mrf.mxu0
    %v1239 = vadd.f32 %v1070, %v1238
    %1240 = vmatmul.bf16.gmra.mxu0 %v751
    %v1241 = vpop.f32.mrf.mxu0
    %v1242 = vadd.f32 %v1073, %v1241
    %v1243 = vpop.f32.mrf.mxu0
    %v1244 = vadd.f32 %v1075, %v1243
    %1245 = vmatmul.bf16.gmra.mxu0 %v761
    %v1246 = vpop.f32.mrf.mxu0
    %v1247 = vadd.f32 %v1078, %v1246
    %v1248 = vpop.f32.mrf.mxu0
    %v1249 = vadd.f32 %v1080, %v1248
    %1250 = vmatmul.bf16.gmra.mxu0 %v771
    %v1251 = vpop.f32.mrf.mxu0
    %v1252 = vadd.f32 %v1083, %v1251
    %v1253 = vpop.f32.mrf.mxu0
    %v1254 = vadd.f32 %v1085, %v1253
    %1255 = vmatmul.bf16.gmra.mxu0 %v781
    %v1256 = vpop.f32.mrf.mxu0
    %v1257 = vadd.f32 %v1088, %v1256
    %v1258 = vpop.f32.mrf.mxu0
    %v1259 = vadd.f32 %v1090, %v1258
    %1260 = vmatmul.bf16.gmra.mxu0 %v791
    %v1261 = vpop.f32.mrf.mxu0
    %v1262 = vadd.f32 %v1093, %v1261
    %v1263 = vpop.f32.mrf.mxu0
    %v1264 = vadd.f32 %v1095, %v1263
    %1265 = vmatmul.bf16.gmra.mxu0 %v801
    %v1266 = vpop.f32.mrf.mxu0
    %v1267 = vadd.f32 %v1098, %v1266
    %v1268 = vpop.f32.mrf.mxu0
    %v1269 = vadd.f32 %v1100, %v1268
    %1270 = vmatmul.bf16.gmra.mxu0 %v811
    %v1271 = vpop.f32.mrf.mxu0
    %v1272 = vadd.f32 %v1103, %v1271
    %v1273 = vpop.f32.mrf.mxu0
    %v1274 = vadd.f32 %v1105, %v1273
    %1275 = vmatmul.bf16.gmra.mxu0 %v821
    %v1276 = vpop.f32.mrf.mxu0
    %v1277 = vadd.f32 %v1108, %v1276
    %v1278 = vpop.f32.mrf.mxu0
    %v1279 = vadd.f32 %v1110, %v1278
    %1280 = vmatmul.bf16.gmra.mxu0 %v831
    %v1281 = vpop.f32.mrf.mxu0
    %v1282 = vadd.f32 %v1113, %v1281
    %v1283 = vpop.f32.mrf.mxu0
    %v1284 = vadd.f32 %v1115, %v1283
    %1285 = vmatmul.bf16.gmra.mxu0 %v841
    %v1286 = vpop.f32.mrf.mxu0
    %v1287 = vadd.f32 %v1118, %v1286
    %v1288 = vpop.f32.mrf.mxu0
    %v1289 = vadd.f32 %v1120, %v1288
    %1290 = vmatmul.bf16.gmra.mxu0 %v851
    %v1291 = vpop.f32.mrf.mxu0
    %v1292 = vadd.f32 %v1123, %v1291
    %v1293 = vpop.f32.mrf.mxu0
    %v1294 = vadd.f32 %v1125, %v1293
    %1295 = vmatmul.bf16.gmra.mxu0 %v861
    %v1296 = vpop.f32.mrf.mxu0
    %v1297 = vadd.f32 %v1128, %v1296
    %v1298 = vpop.f32.mrf.mxu0
    %v1299 = vadd.f32 %v1130, %v1298
    %1300 = vmatmul.bf16.gmra.mxu0 %v871
    %v1301 = vpop.f32.mrf.mxu0
    %v1302 = vadd.f32 %v1133, %v1301
    %v1303 = vpop.f32.mrf.mxu0
    %v1304 = vadd.f32 %v1135, %v1303
    %1305 = vmatmul.bf16.gmra.mxu0 %v881
    %v1306 = vpop.f32.mrf.mxu0
    %v1307 = vadd.f32 %v1138, %v1306
    %v1308 = vpop.f32.mrf.mxu0
    %v1309 = vadd.f32 %v1140, %v1308
    %1310 = vmatmul.bf16.gmra.mxu0 %v891
    %v1311 = vpop.f32.mrf.mxu0
    %v1312 = vadd.f32 %v1143, %v1311
    %v1313 = vpop.f32.mrf.mxu0
    %v1314 = vadd.f32 %v1145, %v1313
    %1315 = vmatmul.bf16.gmra.mxu0 %v901
    %v1316 = vpop.f32.mrf.mxu0
    %v1317 = vadd.f32 %v1148, %v1316
    %v1318 = vpop.f32.mrf.mxu0
    %v1319 = vadd.f32 %v1150, %v1318
    %1320 = vmatmul.bf16.gmra.mxu0 %v911
    %v1321 = vpop.f32.mrf.mxu0
    %v1322 = vadd.f32 %v1153, %v1321
    %v1323 = vpop.f32.mrf.mxu0
    %v1324 = vadd.f32 %v1155, %v1323
    %1325 = vmatmul.bf16.gmra.mxu0 %v921
    %v1326 = vpop.f32.mrf.mxu0
    %v1327 = vadd.f32 %v1158, %v1326
    %v1328 = vpop.f32.mrf.mxu0
    %v1329 = vadd.f32 %v1160, %v1328
    %1330 = vmatmul.bf16.gmra.mxu0 %v931
    %v1331 = vpop.f32.mrf.mxu0
    %v1332 = vadd.f32 %v1163, %v1331
    %v1333 = vpop.f32.mrf.mxu0
    %v1334 = vadd.f32 %v1165, %v1333
    %1335 = vdwg.mxu0
    %v1336 = vadd.f32 %v934, %v1177
    %v1337 = vadd.f32 %v935, %v1179
    %v1338 = vadd.f32 %v936, %v1182
    %v1339 = vadd.f32 %v937, %v1184
    %v1340 = vadd.f32 %v938, %v1187
    %v1341 = vadd.f32 %v939, %v1189
    %v1342 = vadd.f32 %v940, %v1192
    %v1343 = vadd.f32 %v941, %v1194
    %v1344 = vadd.f32 %v942, %v1197
    %v1345 = vadd.f32 %v943, %v1199
    %v1346 = vadd.f32 %v944, %v1202
    %v1347 = vadd.f32 %v945, %v1204
    %v1348 = vadd.f32 %v946, %v1207
    %v1349 = vadd.f32 %v947, %v1209
    %v1350 = vadd.f32 %v948, %v1212
    %v1351 = vadd.f32 %v949, %v1214
    %v1352 = vadd.f32 %v950, %v1217
    %v1353 = vadd.f32 %v951, %v1219
    %v1354 = vadd.f32 %v952, %v1222
    %v1355 = vadd.f32 %v953, %v1224
    %v1356 = vadd.f32 %v954, %v1227
    %v1357 = vadd.f32 %v955, %v1229
    %v1358 = vadd.f32 %v956, %v1232
    %v1359 = vadd.f32 %v957, %v1234
    %v1360 = vadd.f32 %v958, %v1237
    %v1361 = vadd.f32 %v959, %v1239
    %v1362 = vadd.f32 %v960, %v1242
    %v1363 = vadd.f32 %v961, %v1244
    %v1364 = vadd.f32 %v962, %v1247
    %v1365 = vadd.f32 %v963, %v1249
    %v1366 = vadd.f32 %v964, %v1252
    %v1367 = vadd.f32 %v965, %v1254
    %v1368 = vadd.f32 %v966, %v1257
    %v1369 = vadd.f32 %v967, %v1259
    %v1370 = vadd.f32 %v968, %v1262
    %v1371 = vadd.f32 %v969, %v1264
    %v1372 = vadd.f32 %v970, %v1267
    %v1373 = vadd.f32 %v971, %v1269
    %v1374 = vadd.f32 %v972, %v1272
    %v1375 = vadd.f32 %v973, %v1274
    %v1376 = vadd.f32 %v974, %v1277
    %v1377 = vadd.f32 %v975, %v1279
    %v1378 = vadd.f32 %v976, %v1282
    %v1379 = vadd.f32 %v977, %v1284
    %v1380 = vadd.f32 %v978, %v1287
    %v1381 = vadd.f32 %v979, %v1289
    %v1382 = vadd.f32 %v980, %v1292
    %v1383 = vadd.f32 %v981, %v1294
    %v1384 = vadd.f32 %v982, %v1297
    %v1385 = vadd.f32 %v983, %v1299
    %v1386 = vadd.f32 %v984, %v1302
    %v1387 = vadd.f32 %v985, %v1304
    %v1388 = vadd.f32 %v986, %v1307
    %v1389 = vadd.f32 %v987, %v1309
    %v1390 = vadd.f32 %v988, %v1312
    %v1391 = vadd.f32 %v989, %v1314
    %v1392 = vadd.f32 %v990, %v1317
    %v1393 = vadd.f32 %v991, %v1319
    %v1394 = vadd.f32 %v992, %v1322
    %v1395 = vadd.f32 %v993, %v1324
    %v1396 = vadd.f32 %v994, %v1327
    %v1397 = vadd.f32 %v995, %v1329
    %v1398 = vadd.f32 %v996, %v1332
    %v1399 = vadd.f32 %v997, %v1334
    %vm1400 = vcmask 7168
    %1401 = vst.msk [vmem:[%s4] sm:$0xff] %vm1400, %v1336
    %1402 = vst.msk [vmem:[%s4 + $0x8] sm:$0xff] %vm1400, %v1337
    %1403 = vst.msk [vmem:[%s4 + $0x10] sm:$0xff] %vm1400, %v1338
    %1404 = vst.msk [vmem:[%s4 + $0x18] sm:$0xff] %vm1400, %v1339
    %1405 = vst.msk [vmem:[%s4 + $0x20] sm:$0xff] %vm1400, %v1340
    %1406 = vst.msk [vmem:[%s4 + $0x28] sm:$0xff] %vm1400, %v1341
    %1407 = vst.msk [vmem:[%s4 + $0x30] sm:$0xff] %vm1400, %v1342
    %1408 = vst.msk [vmem:[%s4 + $0x38] sm:$0xff] %vm1400, %v1343
    %1409 = vst.msk [vmem:[%s4 + $0x40] sm:$0xff] %vm1400, %v1344
    %1410 = vst.msk [vmem:[%s4 + $0x48] sm:$0xff] %vm1400, %v1345
    %1411 = vst.msk [vmem:[%s4 + $0x50] sm:$0xff] %vm1400, %v1346
    %1412 = vst.msk [vmem:[%s4 + $0x58] sm:$0xff] %vm1400, %v1347
    %1413 = vst.msk [vmem:[%s4 + $0x60] sm:$0xff] %vm1400, %v1348
    %1414 = vst.msk [vmem:[%s4 + $0x68] sm:$0xff] %vm1400, %v1349
    %1415 = vst.msk [vmem:[%s4 + $0x70] sm:$0xff] %vm1400, %v1350
    %1416 = vst.msk [vmem:[%s4 + $0x78] sm:$0xff] %vm1400, %v1351
    %1417 = vst.msk [vmem:[%s4 + $0x80] sm:$0xff] %vm1400, %v1352
    %1418 = vst.msk [vmem:[%s4 + $0x88] sm:$0xff] %vm1400, %v1353
    %1419 = vst.msk [vmem:[%s4 + $0x90] sm:$0xff] %vm1400, %v1354
    %1420 = vst.msk [vmem:[%s4 + $0x98] sm:$0xff] %vm1400, %v1355
    %1421 = vst.msk [vmem:[%s4 + $0xa0] sm:$0xff] %vm1400, %v1356
    %1422 = vst.msk [vmem:[%s4 + $0xa8] sm:$0xff] %vm1400, %v1357
    %1423 = vst.msk [vmem:[%s4 + $0xb0] sm:$0xff] %vm1400, %v1358
    %1424 = vst.msk [vmem:[%s4 + $0xb8] sm:$0xff] %vm1400, %v1359
    %1425 = vst.msk [vmem:[%s4 + $0xc0] sm:$0xff] %vm1400, %v1360
    %1426 = vst.msk [vmem:[%s4 + $0xc8] sm:$0xff] %vm1400, %v1361
    %1427 = vst.msk [vmem:[%s4 + $0xd0] sm:$0xff] %vm1400, %v1362
    %1428 = vst.msk [vmem:[%s4 + $0xd8] sm:$0xff] %vm1400, %v1363
    %1429 = vst.msk [vmem:[%s4 + $0xe0] sm:$0xff] %vm1400, %v1364
    %1430 = vst.msk [vmem:[%s4 + $0xe8] sm:$0xff] %vm1400, %v1365
    %1431 = vst.msk [vmem:[%s4 + $0xf0] sm:$0xff] %vm1400, %v1366
    %1432 = vst.msk [vmem:[%s4 + $0xf8] sm:$0xff] %vm1400, %v1367
    %1433 = vst.msk [vmem:[%s4 + $0x100] sm:$0xff] %vm1400, %v1368
    %1434 = vst.msk [vmem:[%s4 + $0x108] sm:$0xff] %vm1400, %v1369
    %1435 = vst.msk [vmem:[%s4 + $0x110] sm:$0xff] %vm1400, %v1370
    %1436 = vst.msk [vmem:[%s4 + $0x118] sm:$0xff] %vm1400, %v1371
    %1437 = vst.msk [vmem:[%s4 + $0x120] sm:$0xff] %vm1400, %v1372
    %1438 = vst.msk [vmem:[%s4 + $0x128] sm:$0xff] %vm1400, %v1373
    %1439 = vst.msk [vmem:[%s4 + $0x130] sm:$0xff] %vm1400, %v1374
    %1440 = vst.msk [vmem:[%s4 + $0x138] sm:$0xff] %vm1400, %v1375
    %1441 = vst.msk [vmem:[%s4 + $0x140] sm:$0xff] %vm1400, %v1376
    %1442 = vst.msk [vmem:[%s4 + $0x148] sm:$0xff] %vm1400, %v1377
    %1443 = vst.msk [vmem:[%s4 + $0x150] sm:$0xff] %vm1400, %v1378
    %1444 = vst.msk [vmem:[%s4 + $0x158] sm:$0xff] %vm1400, %v1379
    %1445 = vst.msk [vmem:[%s4 + $0x160] sm:$0xff] %vm1400, %v1380
    %1446 = vst.msk [vmem:[%s4 + $0x168] sm:$0xff] %vm1400, %v1381
    %1447 = vst.msk [vmem:[%s4 + $0x170] sm:$0xff] %vm1400, %v1382
    %1448 = vst.msk [vmem:[%s4 + $0x178] sm:$0xff] %vm1400, %v1383
    %1449 = vst.msk [vmem:[%s4 + $0x180] sm:$0xff] %vm1400, %v1384
    %1450 = vst.msk [vmem:[%s4 + $0x188] sm:$0xff] %vm1400, %v1385
    %1451 = vst.msk [vmem:[%s4 + $0x190] sm:$0xff] %vm1400, %v1386
    %1452 = vst.msk [vmem:[%s4 + $0x198] sm:$0xff] %vm1400, %v1387
    %1453 = vst.msk [vmem:[%s4 + $0x1a0] sm:$0xff] %vm1400, %v1388
    %1454 = vst.msk [vmem:[%s4 + $0x1a8] sm:$0xff] %vm1400, %v1389
    %1455 = vst.msk [vmem:[%s4 + $0x1b0] sm:$0xff] %vm1400, %v1390
    %1456 = vst.msk [vmem:[%s4 + $0x1b8] sm:$0xff] %vm1400, %v1391
    %1457 = vst.msk [vmem:[%s4 + $0x1c0] sm:$0xff] %vm1400, %v1392
    %1458 = vst.msk [vmem:[%s4 + $0x1c8] sm:$0xff] %vm1400, %v1393
    %1459 = vst.msk [vmem:[%s4 + $0x1d0] sm:$0xff] %vm1400, %v1394
    %1460 = vst.msk [vmem:[%s4 + $0x1d8] sm:$0xff] %vm1400, %v1395
    %1461 = vst.msk [vmem:[%s4 + $0x1e0] sm:$0xff] %vm1400, %v1396
    %1462 = vst.msk [vmem:[%s4 + $0x1e8] sm:$0xff] %vm1400, %v1397
    %1463 = vst.msk [vmem:[%s4 + $0x1f0] sm:$0xff] %vm1400, %v1398
    %1464 = vst.msk [vmem:[%s4 + $0x1f8] sm:$0xff] %vm1400, %v1399
    // Predicated region
    $region26: #{tpu_custom_call.1} parent=1 // pred_check
      _
    $region27: #{tpu_custom_call.1} parent=1 // pred_check_branch
      %1466 = sbr.rel (0) target = $region29
    $region28: #{tpu_custom_call.1} parent=1 // pred_region
      _
    $region29: #{tpu_custom_call.1} parent=1 // pred_fallthru
      _
    // Predicated region
    $region30: #{tpu_custom_call.1} parent=1 // pred_check
      _
    $region31: #{tpu_custom_call.1} parent=1 // pred_check_branch
      %1468 = sbr.rel (0) target = $region33
    $region32: #{tpu_custom_call.1} parent=1 // pred_region
      _
    $region33: #{tpu_custom_call.1} parent=1 // pred_fallthru
      _
    %1469 = vsyncpa [#allocation3], 1

</llo_original>
